<compile_context>
chip_gen: v7x
topology: tpu7x:2x2x1
jax: 0.10.0
libtpu: 0.0.40
codegen_flags: <defaults>
</compile_context>

<pallas_src>
import functools

import numpy as np
import jax
import jax.numpy as jnp
from jax.experimental import pallas as pl
from jax.experimental.pallas import tpu as pltpu

EPS = 1e-5  # BatchNorm1d default eps


# ------------------------------ Pallas kernel --------------------------------

def _dwconv_mobile_kernel(taps_ref, wpw_ref, pvec_ref, sT_ref, pg_ref, seg_ref,
                          ecab_ref, o_ref, *, batch, lout):
    """Fused DWConvMobile forward.  Internal layout (C, M), M = batch*lout."""
    m = batch * lout

    # packed per-channel vectors: cols [wdw0..wdw4, bdw, bpw, gamma, beta, pad]
    w0 = pvec_ref[:, 0:1]
    w1 = pvec_ref[:, 1:2]
    w2 = pvec_ref[:, 2:3]
    w3 = pvec_ref[:, 3:4]
    w4 = pvec_ref[:, 4:5]
    bdw = pvec_ref[:, 5:6]
    bpw = pvec_ref[:, 6:7]
    gamma = pvec_ref[:, 7:8]
    beta = pvec_ref[:, 8:9]

    # ---- depthwise conv (k=5, s=2, p=2, groups=C): 5 VPU FMAs over the
    #      pre-sliced strided taps, pairwise tree (serial depth 3).
    acc = ((taps_ref[0] * w0 + taps_ref[1] * w1)
           + (taps_ref[2] * w2 + taps_ref[3] * w3)
           + (taps_ref[4] * w4 + bdw))                               # (C, M)

    # ---- pointwise 1x1 conv: one (C,C) x (C,M) MXU matmul.
    # NOTE: set precision=jax.lax.Precision.HIGHEST here if tighter BN-stat
    # accuracy is ever needed; default passes the 5e-2 tolerance comfortably.
    pw = jnp.dot(wpw_ref[...], acc,
                 preferred_element_type=jnp.float32) + bpw           # (C, M)

    # ---- BatchNorm1d (training mode, biased batch stats over batch*length):
    #      single pass (sum, sum-of-squares) + fused scale/shift + ReLU.
    inv_m = 1.0 / float(m)
    s1 = jnp.sum(pw, axis=1, keepdims=True)
    s2 = jnp.sum(pw * pw, axis=1, keepdims=True)
    mu = s1 * inv_m
    var = s2 * inv_m - mu * mu
    a = gamma * jax.lax.rsqrt(var + EPS)
    b_ = beta - a * mu
    y = jnp.maximum(pw * a + b_, 0.0)                                # (C, M)

    # ---- Channel_Shuffle(groups == num_channels) is an identity: no-op.

    # ---- DSECA.
    # GAP via MXU: (C,M) x (M,B), Pg holds 1/Lout inside each batch segment.
    gap = jnp.dot(y, pg_ref[...], preferred_element_type=jnp.float32)   # (C, B)
    # GMP: per-batch lane slice + lane reduce (no matmul form for max).
    gmp_cols = [jnp.max(y[:, b * lout:(b + 1) * lout], axis=1, keepdims=True)
                for b in range(batch)]
    gmp = gmp_cols[0] if batch == 1 else jnp.concatenate(gmp_cols, axis=1)  # (C, B)

    # ECA Conv1d(1,1,3,s=2,p=1) over the channel vectors, as two tiny matmuls;
    # channels [0, C/2) are gated by conv(GAP), [C/2, C) by conv(GMP).
    eca_b = ecab_ref[0, 0]
    cg = jnp.dot(sT_ref[...], gap, preferred_element_type=jnp.float32) + eca_b
    cm = jnp.dot(sT_ref[...], gmp, preferred_element_type=jnp.float32) + eca_b
    mask = jax.nn.sigmoid(jnp.concatenate([cg, cm], axis=0))         # (C, B)

    # Gate broadcast via MXU: (C,B) x (B,M) 0/1 segment indicator.
    mask_full = jnp.dot(mask, seg_ref[...],
                        preferred_element_type=jnp.float32)          # (C, M)
    gated = y * mask_full

    # ---- write torch NCL layout (B, C, Lout) directly (no external transpose).
    for b in range(batch):
        o_ref[b, :, :] = gated[:, b * lout:(b + 1) * lout]


# ------------------------------ wrapper / glue --------------------------------

def dwconv_mobile(x, kparams):
    """x: (B, C, L) in NCL layout (torch Conv1d). Returns (B, C, Lout)."""
    B, C, L = x.shape
    Lout = (L + 2 * 2 - 5) // 2 + 1
    M = B * Lout

    # Channel-major taps: 5 strided lax.slice's of the padded input (no gather).
    xt = jnp.transpose(x, (1, 0, 2))                                 # (C, B, L)
    xp = jnp.pad(xt, ((0, 0), (0, 0), (2, 2)))                       # (C, B, L+4)
    taps = jnp.stack(
        [jax.lax.slice(xp, (0, 0, k), (C, B, k + 2 * Lout - 1), (1, 1, 2))
         for k in range(5)], axis=0).reshape(5, C, M)                # (5, C, M)

    # Host-built constants (folded at trace time): segment indicator and GAP
    # pooling matrix.
    seg_np = np.kron(np.eye(B, dtype=np.float32),
                     np.ones((1, Lout), dtype=np.float32))           # (B, M) 0/1
    seg = jnp.asarray(seg_np)
    pg = jnp.asarray(seg_np.T / np.float32(Lout))                    # (M, B)

    vmem = pl.BlockSpec(memory_space=pltpu.MemorySpace.VMEM)
    smem = pl.BlockSpec(memory_space=pltpu.MemorySpace.SMEM)
    return pl.pallas_call(
        functools.partial(_dwconv_mobile_kernel, batch=B, lout=Lout),
        out_shape=jax.ShapeDtypeStruct((B, C, Lout), jnp.float32),
        in_specs=[vmem, vmem, vmem, vmem, vmem, vmem, smem],
        out_specs=vmem,
    )(taps, kparams["wpw"], kparams["pvec"], kparams["sT"], pg, seg,
      kparams["eca_b"])


# ------------------------------ parameters ------------------------------------

def _eca_conv_matrix_T(w3, channels):
    """Conv1d(1,1,k=3,pad=1,stride=2) over a length-`channels` vector, as a
    (channels//2, channels) matrix applied from the left."""
    half = channels // 2
    sT = np.zeros((half, channels), np.float32)
    for j in range(half):
        for k in range(3):
            i = 2 * j + k - 1
            if 0 <= i < channels:
                sT[j, i] = float(w3[k])
    return jnp.asarray(sT)


def init_params(key, n_neuron):
    """Random parameters in torch layout (`raw`) + kernel-layout prepack."""
    f32 = jnp.float32
    C = 2 * n_neuron
    ks = jax.random.split(key, 6)
    raw = dict(
        dw_w=0.1 * jax.random.normal(ks[0], (C, 1, 5), f32),   # depthwise Conv1d
        dw_b=0.1 * jax.random.normal(ks[1], (C,), f32),
        pw_w=0.1 * jax.random.normal(ks[2], (C, C, 1), f32),   # pointwise Conv1d
        pw_b=0.1 * jax.random.normal(ks[3], (C,), f32),
        gamma=jnp.ones((C,), f32),                             # fresh BatchNorm1d
        beta=jnp.zeros((C,), f32),
        eca_w=0.3 * jax.random.normal(ks[4], (3,), f32),       # DSECA Conv1d(1,1,3)
        eca_b=0.1 * jax.random.normal(ks[5], (), f32),
    )
    # One packed (C, 16) tile: [wdw0..wdw4, bdw, bpw, gamma, beta, zero pad].
    pvec = jnp.concatenate([
        raw["dw_w"][:, 0, :],                                   # (C, 5)
        raw["dw_b"][:, None],                                   # (C, 1)
        raw["pw_b"][:, None],                                   # (C, 1)
        raw["gamma"][:, None],                                  # (C, 1)
        raw["beta"][:, None],                                   # (C, 1)
        jnp.zeros((C, 7), f32),
    ], axis=1)                                                  # (C, 16)
    kparams = dict(
        wpw=raw["pw_w"][:, :, 0],                               # (C, C)
        pvec=pvec,                                              # (C, 16)
        sT=_eca_conv_matrix_T(np.asarray(raw["eca_w"]), C),     # (C/2, C)
        eca_b=raw["eca_b"].reshape(1, 1),                       # (1, 1) -> SMEM
    )
    return raw, kparams


# ------------------------------ pure-JAX reference -----------------------------

def dwconv_mobile_reference(x, raw):
    """Independent pure-JAX reference in torch NCL layout."""
    B, C, L = x.shape
    Lout = (L + 2 * 2 - 5) // 2 + 1
    xp = jnp.pad(x, ((0, 0), (0, 0), (2, 2)))
    acc = 0.0
    for k in range(5):
        tk = jax.lax.slice(xp, (0, 0, k), (B, C, k + 2 * Lout - 1), (1, 1, 2))
        acc = acc + tk * raw["dw_w"][:, 0, k][None, :, None]
    dw = acc + raw["dw_b"][None, :, None]
    pw = jnp.einsum("oc,bcl->bol", raw["pw_w"][:, :, 0], dw)
    pw = pw + raw["pw_b"][None, :, None]
    mu = jnp.mean(pw, axis=(0, 2), keepdims=True)
    var = jnp.mean(jnp.square(pw - mu), axis=(0, 2), keepdims=True)
    y = (pw - mu) * jax.lax.rsqrt(var + EPS)
    y = y * raw["gamma"][None, :, None] + raw["beta"][None, :, None]
    y = jnp.maximum(y, 0.0)
    # Channel_Shuffle(groups == C): identity
    gap = jnp.mean(y, axis=2)                       # (B, C)
    gmp = jnp.max(y, axis=2)                        # (B, C)

    def eca_conv(v):                                # Conv1d(1,1,3,s=2,p=1) over C
        vp = jnp.pad(v, ((0, 0), (1, 1)))
        w = raw["eca_w"]
        return (w[0] * vp[:, 0:C:2] + w[1] * vp[:, 1:C + 1:2]
                + w[2] * vp[:, 2:C + 2:2] + raw["eca_b"])

    mask = jax.nn.sigmoid(jnp.concatenate([eca_conv(gap), eca_conv(gmp)], axis=1))
    return y * mask[:, :, None]


# ----------------------------------- main --------------------------------------

if __name__ == "__main__":
    key = jax.random.PRNGKey(0)
    kx, kp = jax.random.split(key)
    B, N_NEURON, L = 2, 32, 48                      # small shapes: C=64, Lout=24
    C = 2 * N_NEURON
    x = jax.random.normal(kx, (B, C, L), dtype=jnp.float32)
    raw, kparams = init_params(kp, N_NEURON)

    fwd = jax.jit(dwconv_mobile)
    out = jax.block_until_ready(fwd(x, kparams))

    Lout = (L + 2 * 2 - 5) // 2 + 1
    assert out.shape == (B, C, Lout), out.shape
    assert bool(jnp.all(jnp.isfinite(out)))

    ref = dwconv_mobile_reference(x, raw)
    err = float(jnp.max(jnp.abs(out - ref)))
    # loose tolerance: MXU f32 matmul default precision may differ from XLA einsum
    assert err < 5e-2, f"max abs err vs reference: {err}"
    print("KERNEL_OK")
</pallas_src>

<mosaic_0001>
module attributes {stable_mosaic.version = 11 : i64} {
  func.func @_dwconv_mobile_kernel(%arg0: memref<5x64x48xf32, #tpu.memory_space<vmem>>, %arg1: memref<64x64xf32, #tpu.memory_space<vmem>>, %arg2: memref<64x16xf32, #tpu.memory_space<vmem>>, %arg3: memref<32x64xf32, #tpu.memory_space<vmem>>, %arg4: memref<48x2xf32, #tpu.memory_space<vmem>>, %arg5: memref<2x48xf32, #tpu.memory_space<vmem>>, %arg6: memref<1x1xf32, #tpu.memory_space<smem>>, %arg7: memref<2x64x24xf32, #tpu.memory_space<vmem>>) attributes {dimension_semantics = [], scalar_prefetch = 0 : i64, scratch_operands = 0 : i64, tpu.core_type = #tpu.core_type<tc>} {
    %c0 = arith.constant 0 : index
    %c0_0 = arith.constant 0 : index
    %0 = vector.load %arg2[%c0, %c0_0] : memref<64x16xf32, #tpu.memory_space<vmem>>, vector<64x1xf32>
    %c0_1 = arith.constant 0 : index
    %c1 = arith.constant 1 : index
    %1 = vector.load %arg2[%c0_1, %c1] : memref<64x16xf32, #tpu.memory_space<vmem>>, vector<64x1xf32>
    %c0_2 = arith.constant 0 : index
    %c2 = arith.constant 2 : index
    %2 = vector.load %arg2[%c0_2, %c2] : memref<64x16xf32, #tpu.memory_space<vmem>>, vector<64x1xf32>
    %c0_3 = arith.constant 0 : index
    %c3 = arith.constant 3 : index
    %3 = vector.load %arg2[%c0_3, %c3] : memref<64x16xf32, #tpu.memory_space<vmem>>, vector<64x1xf32>
    %c0_4 = arith.constant 0 : index
    %c4 = arith.constant 4 : index
    %4 = vector.load %arg2[%c0_4, %c4] : memref<64x16xf32, #tpu.memory_space<vmem>>, vector<64x1xf32>
    %c0_5 = arith.constant 0 : index
    %c5 = arith.constant 5 : index
    %5 = vector.load %arg2[%c0_5, %c5] : memref<64x16xf32, #tpu.memory_space<vmem>>, vector<64x1xf32>
    %c0_6 = arith.constant 0 : index
    %c6 = arith.constant 6 : index
    %6 = vector.load %arg2[%c0_6, %c6] : memref<64x16xf32, #tpu.memory_space<vmem>>, vector<64x1xf32>
    %c0_7 = arith.constant 0 : index
    %c7 = arith.constant 7 : index
    %7 = vector.load %arg2[%c0_7, %c7] : memref<64x16xf32, #tpu.memory_space<vmem>>, vector<64x1xf32>
    %c0_8 = arith.constant 0 : index
    %c8 = arith.constant 8 : index
    %8 = vector.load %arg2[%c0_8, %c8] : memref<64x16xf32, #tpu.memory_space<vmem>>, vector<64x1xf32>
    %c0_9 = arith.constant 0 : index
    %c0_10 = arith.constant 0 : index
    %c0_11 = arith.constant 0 : index
    %9 = vector.load %arg0[%c0_9, %c0_10, %c0_11] : memref<5x64x48xf32, #tpu.memory_space<vmem>>, vector<1x64x48xf32>
    %10 = vector.shape_cast %9 : vector<1x64x48xf32> to vector<64x48xf32>
    %11 = vector.broadcast %0 : vector<64x1xf32> to vector<64x48xf32>
    %12 = arith.mulf %10, %11 : vector<64x48xf32>
    %c1_12 = arith.constant 1 : index
    %c0_13 = arith.constant 0 : index
    %c0_14 = arith.constant 0 : index
    %13 = vector.load %arg0[%c1_12, %c0_13, %c0_14] : memref<5x64x48xf32, #tpu.memory_space<vmem>>, vector<1x64x48xf32>
    %14 = vector.shape_cast %13 : vector<1x64x48xf32> to vector<64x48xf32>
    %15 = vector.broadcast %1 : vector<64x1xf32> to vector<64x48xf32>
    %16 = arith.mulf %14, %15 : vector<64x48xf32>
    %17 = arith.addf %12, %16 : vector<64x48xf32>
    %c2_15 = arith.constant 2 : index
    %c0_16 = arith.constant 0 : index
    %c0_17 = arith.constant 0 : index
    %18 = vector.load %arg0[%c2_15, %c0_16, %c0_17] : memref<5x64x48xf32, #tpu.memory_space<vmem>>, vector<1x64x48xf32>
    %19 = vector.shape_cast %18 : vector<1x64x48xf32> to vector<64x48xf32>
    %20 = vector.broadcast %2 : vector<64x1xf32> to vector<64x48xf32>
    %21 = arith.mulf %19, %20 : vector<64x48xf32>
    %c3_18 = arith.constant 3 : index
    %c0_19 = arith.constant 0 : index
    %c0_20 = arith.constant 0 : index
    %22 = vector.load %arg0[%c3_18, %c0_19, %c0_20] : memref<5x64x48xf32, #tpu.memory_space<vmem>>, vector<1x64x48xf32>
    %23 = vector.shape_cast %22 : vector<1x64x48xf32> to vector<64x48xf32>
    %24 = vector.broadcast %3 : vector<64x1xf32> to vector<64x48xf32>
    %25 = arith.mulf %23, %24 : vector<64x48xf32>
    %26 = arith.addf %21, %25 : vector<64x48xf32>
    %27 = arith.addf %17, %26 : vector<64x48xf32>
    %c4_21 = arith.constant 4 : index
    %c0_22 = arith.constant 0 : index
    %c0_23 = arith.constant 0 : index
    %28 = vector.load %arg0[%c4_21, %c0_22, %c0_23] : memref<5x64x48xf32, #tpu.memory_space<vmem>>, vector<1x64x48xf32>
    %29 = vector.shape_cast %28 : vector<1x64x48xf32> to vector<64x48xf32>
    %30 = vector.broadcast %4 : vector<64x1xf32> to vector<64x48xf32>
    %31 = arith.mulf %29, %30 : vector<64x48xf32>
    %32 = vector.broadcast %5 : vector<64x1xf32> to vector<64x48xf32>
    %33 = arith.addf %31, %32 : vector<64x48xf32>
    %34 = arith.addf %27, %33 : vector<64x48xf32>
    %c0_24 = arith.constant 0 : index
    %c0_25 = arith.constant 0 : index
    %35 = vector.load %arg1[%c0_24, %c0_25] : memref<64x64xf32, #tpu.memory_space<vmem>>, vector<64x64xf32>
    %cst = arith.constant dense<0.000000e+00> : vector<64x48xf32>
    %36 = tpu.matmul %35, %34, %cst {dimension_numbers = #tpu.dot_dimension_numbers<[1], [0], [0], [1], [0, 0, 1, 1], [], []>} : vector<64x64xf32>, vector<64x48xf32>, vector<64x48xf32> -> vector<64x48xf32>
    %37 = vector.broadcast %6 : vector<64x1xf32> to vector<64x48xf32>
    %38 = arith.addf %36, %37 : vector<64x48xf32>
    %cst_26 = arith.constant dense<0.000000e+00> : vector<64xf32>
    %39 = vector.multi_reduction <add>, %38, %cst_26 [1] : vector<64x48xf32> to vector<64xf32>
    %40 = vector.shape_cast %39 : vector<64xf32> to vector<64x1xf32>
    %41 = arith.mulf %38, %38 : vector<64x48xf32>
    %cst_27 = arith.constant dense<0.000000e+00> : vector<64xf32>
    %42 = vector.multi_reduction <add>, %41, %cst_27 [1] : vector<64x48xf32> to vector<64xf32>
    %43 = vector.shape_cast %42 : vector<64xf32> to vector<64x1xf32>
    %cst_28 = arith.constant 0.020833334 : f32
    %44 = vector.broadcast %cst_28 : f32 to vector<64x1xf32>
    %45 = arith.mulf %40, %44 : vector<64x1xf32>
    %cst_29 = arith.constant 0.020833334 : f32
    %46 = vector.broadcast %cst_29 : f32 to vector<64x1xf32>
    %47 = arith.mulf %43, %46 : vector<64x1xf32>
    %48 = arith.mulf %45, %45 : vector<64x1xf32>
    %49 = arith.subf %47, %48 : vector<64x1xf32>
    %cst_30 = arith.constant 9.99999974E-6 : f32
    %50 = vector.broadcast %cst_30 : f32 to vector<64x1xf32>
    %51 = arith.addf %49, %50 : vector<64x1xf32>
    %52 = math.rsqrt %51 : vector<64x1xf32>
    %53 = arith.mulf %7, %52 : vector<64x1xf32>
    %54 = arith.mulf %53, %45 : vector<64x1xf32>
    %55 = arith.subf %8, %54 : vector<64x1xf32>
    %56 = vector.broadcast %53 : vector<64x1xf32> to vector<64x48xf32>
    %57 = arith.mulf %38, %56 : vector<64x48xf32>
    %58 = vector.broadcast %55 : vector<64x1xf32> to vector<64x48xf32>
    %59 = arith.addf %57, %58 : vector<64x48xf32>
    %cst_31 = arith.constant 0.000000e+00 : f32
    %60 = vector.broadcast %cst_31 : f32 to vector<64x48xf32>
    %61 = arith.maximumf %59, %60 : vector<64x48xf32>
    %c0_32 = arith.constant 0 : index
    %c0_33 = arith.constant 0 : index
    %62 = vector.load %arg4[%c0_32, %c0_33] : memref<48x2xf32, #tpu.memory_space<vmem>>, vector<48x2xf32>
    %cst_34 = arith.constant dense<0.000000e+00> : vector<64x2xf32>
    %63 = tpu.matmul %61, %62, %cst_34 {dimension_numbers = #tpu.dot_dimension_numbers<[1], [0], [0], [1], [0, 0, 1, 1], [], []>} : vector<64x48xf32>, vector<48x2xf32>, vector<64x2xf32> -> vector<64x2xf32>
    %64 = vector.extract_strided_slice %61 {offsets = [0, 0], sizes = [64, 24], strides = [1, 1]} : vector<64x48xf32> to vector<64x24xf32>
    %cst_35 = arith.constant dense<0xFF800000> : vector<64xf32>
    %65 = vector.multi_reduction <maximumf>, %64, %cst_35 [1] : vector<64x24xf32> to vector<64xf32>
    %66 = vector.shape_cast %65 : vector<64xf32> to vector<64x1xf32>
    %67 = vector.extract_strided_slice %61 {offsets = [0, 24], sizes = [64, 24], strides = [1, 1]} : vector<64x48xf32> to vector<64x24xf32>
    %cst_36 = arith.constant dense<0xFF800000> : vector<64xf32>
    %68 = vector.multi_reduction <maximumf>, %67, %cst_36 [1] : vector<64x24xf32> to vector<64xf32>
    %69 = vector.shape_cast %68 : vector<64xf32> to vector<64x1xf32>
    %70 = tpu.concatenate %66, %69 in 1 : vector<64x1xf32>, vector<64x1xf32> -> vector<64x2xf32>
    %c0_37 = arith.constant 0 : index
    %c0_38 = arith.constant 0 : index
    %71 = memref.load %arg6[%c0_37, %c0_38] : memref<1x1xf32, #tpu.memory_space<smem>>
    %c0_39 = arith.constant 0 : index
    %c0_40 = arith.constant 0 : index
    %72 = vector.load %arg3[%c0_39, %c0_40] : memref<32x64xf32, #tpu.memory_space<vmem>>, vector<32x64xf32>
    %cst_41 = arith.constant dense<0.000000e+00> : vector<32x2xf32>
    %73 = tpu.matmul %72, %63, %cst_41 {dimension_numbers = #tpu.dot_dimension_numbers<[1], [0], [0], [1], [0, 0, 1, 1], [], []>} : vector<32x64xf32>, vector<64x2xf32>, vector<32x2xf32> -> vector<32x2xf32>
    %74 = vector.broadcast %71 : f32 to vector<32x2xf32>
    %75 = arith.addf %73, %74 : vector<32x2xf32>
    %c0_42 = arith.constant 0 : index
    %c0_43 = arith.constant 0 : index
    %76 = vector.load %arg3[%c0_42, %c0_43] : memref<32x64xf32, #tpu.memory_space<vmem>>, vector<32x64xf32>
    %cst_44 = arith.constant dense<0.000000e+00> : vector<32x2xf32>
    %77 = tpu.matmul %76, %70, %cst_44 {dimension_numbers = #tpu.dot_dimension_numbers<[1], [0], [0], [1], [0, 0, 1, 1], [], []>} : vector<32x64xf32>, vector<64x2xf32>, vector<32x2xf32> -> vector<32x2xf32>
    %78 = vector.broadcast %71 : f32 to vector<32x2xf32>
    %79 = arith.addf %77, %78 : vector<32x2xf32>
    %80 = tpu.concatenate %75, %79 in 0 : vector<32x2xf32>, vector<32x2xf32> -> vector<64x2xf32>
    %81 = arith.negf %80 : vector<64x2xf32>
    %82 = math.exp %81 : vector<64x2xf32>
    %cst_45 = arith.constant 1.000000e+00 : f32
    %83 = vector.broadcast %cst_45 : f32 to vector<64x2xf32>
    %84 = arith.addf %83, %82 : vector<64x2xf32>
    %85 = arith.divf %83, %84 : vector<64x2xf32>
    %c0_46 = arith.constant 0 : index
    %c0_47 = arith.constant 0 : index
    %86 = vector.load %arg5[%c0_46, %c0_47] : memref<2x48xf32, #tpu.memory_space<vmem>>, vector<2x48xf32>
    %cst_48 = arith.constant dense<0.000000e+00> : vector<64x48xf32>
    %87 = tpu.matmul %85, %86, %cst_48 {dimension_numbers = #tpu.dot_dimension_numbers<[1], [0], [0], [1], [0, 0, 1, 1], [], []>} : vector<64x2xf32>, vector<2x48xf32>, vector<64x48xf32> -> vector<64x48xf32>
    %88 = arith.mulf %61, %87 : vector<64x48xf32>
    %89 = vector.extract_strided_slice %88 {offsets = [0, 0], sizes = [64, 24], strides = [1, 1]} : vector<64x48xf32> to vector<64x24xf32>
    %c0_49 = arith.constant 0 : index
    %c0_50 = arith.constant 0 : index
    %c0_51 = arith.constant 0 : index
    %90 = vector.load %arg7[%c0_49, %c0_50, %c0_51] : memref<2x64x24xf32, #tpu.memory_space<vmem>>, vector<1x64x24xf32>
    %91 = vector.shape_cast %90 : vector<1x64x24xf32> to vector<64x24xf32>
    %92 = vector.shape_cast %89 : vector<64x24xf32> to vector<1x64x24xf32>
    tpu.vector_store %arg7[%c0_49, %c0_50, %c0_51], %92 {strides = array<i32>} : memref<2x64x24xf32, #tpu.memory_space<vmem>>, vector<1x64x24xf32>,
    %93 = vector.extract_strided_slice %88 {offsets = [0, 24], sizes = [64, 24], strides = [1, 1]} : vector<64x48xf32> to vector<64x24xf32>
    %c1_52 = arith.constant 1 : index
    %c0_53 = arith.constant 0 : index
    %c0_54 = arith.constant 0 : index
    %94 = vector.load %arg7[%c1_52, %c0_53, %c0_54] : memref<2x64x24xf32, #tpu.memory_space<vmem>>, vector<1x64x24xf32>
    %95 = vector.shape_cast %94 : vector<1x64x24xf32> to vector<64x24xf32>
    %96 = vector.shape_cast %93 : vector<64x24xf32> to vector<1x64x24xf32>
    tpu.vector_store %arg7[%c1_52, %c0_53, %c0_54], %96 {strides = array<i32>} : memref<2x64x24xf32, #tpu.memory_space<vmem>>, vector<1x64x24xf32>,
    return
  }
}

</mosaic_0001>

<llo_original>
// kernel: dwconv_mobile.1
$region0: #{dwconv_mobile.1}
  #allocation0 [shape = 'u32[]', space=smem, size = 0x4, offset = 0x4, fixed_abs, tag = 'smem constant byte address 0x4 - core index']
  #allocation1 [shape = 'u32[144,128]{1,0:T(1,128)}', space=vmem, size = 0x12000, scoped, tag = 'internal scratch']
  #allocation2 [shape = 'f32[1,1]{1,0:T(1,128)S(6)}', space=smem, size = 0x200, scoped, tag = 'scoped memory for dwconv_mobile.1']
  %s0 = inlined_call_operand.vmem [shape: f32[5,64,48], index: 0, kind: input, shape index: {}]
  %s1 = inlined_call_operand.vmem [shape: f32[64,64], index: 1, kind: input, shape index: {}]
  %s2 = inlined_call_operand.vmem [shape: f32[64,16], index: 2, kind: input, shape index: {}]
  %s3 = inlined_call_operand.vmem [shape: f32[32,64], index: 3, kind: input, shape index: {}]
  %s4 = inlined_call_operand.vmem [shape: f32[48,2], index: 4, kind: input, shape index: {}]
  %s5 = inlined_call_operand.vmem [shape: f32[2,48], index: 5, kind: input, shape index: {}]
  %s6 = inlined_call_operand.<no memory space> [shape: f32[1,1], index: 6, kind: input, shape index: {}]
  %s7 = inlined_call_operand.vmem [shape: f32[2,64,24], index: 7, kind: output, shape index: {}]
  %s8 = sld [smem:[#allocation0]]
  $region38: #{dwconv_mobile.1} parent=0
    _
  %s10 = ssub.s32 1, %s8
  %s11 = scalar_select 0, %s10, %s8
  %12 = sst [smem:[#allocation2]] %s6
  // Predicated region
  $region2: #{dwconv_mobile.1} parent=0 // pred_check
    _
  $region3: #{dwconv_mobile.1} parent=0 // pred_check_branch
    %14 = sbr.rel (0) target = $region5
  $region4: #{dwconv_mobile.1} parent=0 // pred_region
    _
  $region5: #{dwconv_mobile.1} parent=0 // pred_fallthru
    _
  // Predicated region
  $region6: #{dwconv_mobile.1} parent=0 // pred_check
    _
  $region7: #{dwconv_mobile.1} parent=0 // pred_check_branch
    %16 = sbr.rel (0) target = $region9
  $region8: #{dwconv_mobile.1} parent=0 // pred_region
    _
  $region9: #{dwconv_mobile.1} parent=0 // pred_fallthru
    _
  // Predicated region
  $region10: #{dwconv_mobile.1} parent=0 // pred_check
    _
  $region11: #{dwconv_mobile.1} parent=0 // pred_check_branch
    %18 = sbr.rel (0) target = $region13
  $region12: #{dwconv_mobile.1} parent=0 // pred_region
    _
  $region13: #{dwconv_mobile.1} parent=0 // pred_fallthru
    _
  // Predicated region
  $region14: #{dwconv_mobile.1} parent=0 // pred_check
    _
  $region15: #{dwconv_mobile.1} parent=0 // pred_check_branch
    %20 = sbr.rel (0) target = $region17
  $region16: #{dwconv_mobile.1} parent=0 // pred_region
    _
  $region17: #{dwconv_mobile.1} parent=0 // pred_fallthru
    _
  // Predicated region
  $region18: #{dwconv_mobile.1} parent=0 // pred_check
    _
  $region19: #{dwconv_mobile.1} parent=0 // pred_check_branch
    %22 = sbr.rel (0) target = $region21
  $region20: #{dwconv_mobile.1} parent=0 // pred_region
    _
  $region21: #{dwconv_mobile.1} parent=0 // pred_fallthru
    _
  // Predicated region
  $region22: #{dwconv_mobile.1} parent=0 // pred_check
    _
  $region23: #{dwconv_mobile.1} parent=0 // pred_check_branch
    %24 = sbr.rel (0) target = $region25
  $region24: #{dwconv_mobile.1} parent=0 // pred_region
    _
  $region25: #{dwconv_mobile.1} parent=0 // pred_fallthru
    _
  // Predicated region
  $region26: #{dwconv_mobile.1} parent=0 // pred_check
    _
  $region27: #{dwconv_mobile.1} parent=0 // pred_check_branch
    %26 = sbr.rel (0) target = $region29
  $region28: #{dwconv_mobile.1} parent=0 // pred_region
    _
  $region29: #{dwconv_mobile.1} parent=0 // pred_fallthru
    _
  %v27 = vld [vmem:[%s2] sm:$0xff]
  %v28 = vld [vmem:[%s2 + $0x8] sm:$0xff]
  %v29 = vld [vmem:[%s2 + $0x10] sm:$0xff]
  %v30 = vld [vmem:[%s2 + $0x18] sm:$0xff]
  %v31 = vld [vmem:[%s2 + $0x20] sm:$0xff]
  %v32 = vld [vmem:[%s2 + $0x28] sm:$0xff]
  %v33 = vld [vmem:[%s2 + $0x30] sm:$0xff]
  %v34 = vld [vmem:[%s2 + $0x38] sm:$0xff]
  %v35 = vld [vmem:[%s0] sm:$0xff]
  %v36 = vld [vmem:[%s0 + $0x8] sm:$0xff]
  %v37 = vld [vmem:[%s0 + $0x10] sm:$0xff]
  %v38 = vld [vmem:[%s0 + $0x18] sm:$0xff]
  %v39 = vld [vmem:[%s0 + $0x20] sm:$0xff]
  %v40 = vld [vmem:[%s0 + $0x28] sm:$0xff]
  %v41 = vld [vmem:[%s0 + $0x30] sm:$0xff]
  %v42 = vld [vmem:[%s0 + $0x38] sm:$0xff]
  %44 = vset.pattern.permute.xlu0 0
  %45 = vperm.xlu0 %44, %v27
  %v46 = vpop.permute.xlu0 %45
  %49 = vset.pattern.permute.xlu0 0
  %50 = vperm.xlu0 %49, %v28
  %v51 = vpop.permute.xlu0 %50
  %54 = vset.pattern.permute.xlu0 0
  %55 = vperm.xlu0 %54, %v29
  %v56 = vpop.permute.xlu0 %55
  %59 = vset.pattern.permute.xlu0 0
  %60 = vperm.xlu0 %59, %v30
  %v61 = vpop.permute.xlu0 %60
  %64 = vset.pattern.permute.xlu0 0
  %65 = vperm.xlu0 %64, %v31
  %v66 = vpop.permute.xlu0 %65
  %69 = vset.pattern.permute.xlu0 0
  %70 = vperm.xlu0 %69, %v32
  %v71 = vpop.permute.xlu0 %70
  %74 = vset.pattern.permute.xlu0 0
  %75 = vperm.xlu0 %74, %v33
  %v76 = vpop.permute.xlu0 %75
  %79 = vset.pattern.permute.xlu0 0
  %80 = vperm.xlu0 %79, %v34
  %v81 = vpop.permute.xlu0 %80
  %v83 = vmul.f32 %v35, %v46
  %v84 = vmul.f32 %v36, %v51
  %v85 = vmul.f32 %v37, %v56
  %v86 = vmul.f32 %v38, %v61
  %v87 = vmul.f32 %v39, %v66
  %v88 = vmul.f32 %v40, %v71
  %v89 = vmul.f32 %v41, %v76
  %v90 = vmul.f32 %v42, %v81
  %s91 = scalar_lea.vmem %s0, 64
  %v92 = vld [vmem:[%s91] sm:$0xff]
  %v93 = vld [vmem:[%s91 + $0x8] sm:$0xff]
  %v94 = vld [vmem:[%s91 + $0x10] sm:$0xff]
  %v95 = vld [vmem:[%s91 + $0x18] sm:$0xff]
  %v96 = vld [vmem:[%s91 + $0x20] sm:$0xff]
  %v97 = vld [vmem:[%s91 + $0x28] sm:$0xff]
  %v98 = vld [vmem:[%s91 + $0x30] sm:$0xff]
  %v99 = vld [vmem:[%s91 + $0x38] sm:$0xff]
  %100 = vset.pattern.permute.xlu0 1
  %101 = vperm.xlu0 %100, %v27
  %v102 = vpop.permute.xlu0 %101
  %104 = vset.pattern.permute.xlu0 1
  %105 = vperm.xlu0 %104, %v28
  %v106 = vpop.permute.xlu0 %105
  %108 = vset.pattern.permute.xlu0 1
  %109 = vperm.xlu0 %108, %v29
  %v110 = vpop.permute.xlu0 %109
  %112 = vset.pattern.permute.xlu0 1
  %113 = vperm.xlu0 %112, %v30
  %v114 = vpop.permute.xlu0 %113
  %116 = vset.pattern.permute.xlu0 1
  %117 = vperm.xlu0 %116, %v31
  %v118 = vpop.permute.xlu0 %117
  %120 = vset.pattern.permute.xlu0 1
  %121 = vperm.xlu0 %120, %v32
  %v122 = vpop.permute.xlu0 %121
  %124 = vset.pattern.permute.xlu0 1
  %125 = vperm.xlu0 %124, %v33
  %v126 = vpop.permute.xlu0 %125
  %128 = vset.pattern.permute.xlu0 1
  %129 = vperm.xlu0 %128, %v34
  %v130 = vpop.permute.xlu0 %129
  %v132 = vmul.f32 %v92, %v102
  %v133 = vmul.f32 %v93, %v106
  %v134 = vmul.f32 %v94, %v110
  %v135 = vmul.f32 %v95, %v114
  %v136 = vmul.f32 %v96, %v118
  %v137 = vmul.f32 %v97, %v122
  %v138 = vmul.f32 %v98, %v126
  %v139 = vmul.f32 %v99, %v130
  %v140 = vadd.f32 %v83, %v132
  %v141 = vadd.f32 %v84, %v133
  %v142 = vadd.f32 %v85, %v134
  %v143 = vadd.f32 %v86, %v135
  %v144 = vadd.f32 %v87, %v136
  %v145 = vadd.f32 %v88, %v137
  %v146 = vadd.f32 %v89, %v138
  %v147 = vadd.f32 %v90, %v139
  %s148 = scalar_lea.vmem %s0, 128
  %v149 = vld [vmem:[%s148] sm:$0xff]
  %v150 = vld [vmem:[%s148 + $0x8] sm:$0xff]
  %v151 = vld [vmem:[%s148 + $0x10] sm:$0xff]
  %v152 = vld [vmem:[%s148 + $0x18] sm:$0xff]
  %v153 = vld [vmem:[%s148 + $0x20] sm:$0xff]
  %v154 = vld [vmem:[%s148 + $0x28] sm:$0xff]
  %v155 = vld [vmem:[%s148 + $0x30] sm:$0xff]
  %v156 = vld [vmem:[%s148 + $0x38] sm:$0xff]
  %157 = vset.pattern.permute.xlu0 2
  %158 = vperm.xlu0 %157, %v27
  %v159 = vpop.permute.xlu0 %158
  %161 = vset.pattern.permute.xlu0 2
  %162 = vperm.xlu0 %161, %v28
  %v163 = vpop.permute.xlu0 %162
  %165 = vset.pattern.permute.xlu0 2
  %166 = vperm.xlu0 %165, %v29
  %v167 = vpop.permute.xlu0 %166
  %169 = vset.pattern.permute.xlu0 2
  %170 = vperm.xlu0 %169, %v30
  %v171 = vpop.permute.xlu0 %170
  %173 = vset.pattern.permute.xlu0 2
  %174 = vperm.xlu0 %173, %v31
  %v175 = vpop.permute.xlu0 %174
  %177 = vset.pattern.permute.xlu0 2
  %178 = vperm.xlu0 %177, %v32
  %v179 = vpop.permute.xlu0 %178
  %181 = vset.pattern.permute.xlu0 2
  %182 = vperm.xlu0 %181, %v33
  %v183 = vpop.permute.xlu0 %182
  %185 = vset.pattern.permute.xlu0 2
  %186 = vperm.xlu0 %185, %v34
  %v187 = vpop.permute.xlu0 %186
  %v189 = vmul.f32 %v149, %v159
  %v190 = vmul.f32 %v150, %v163
  %v191 = vmul.f32 %v151, %v167
  %v192 = vmul.f32 %v152, %v171
  %v193 = vmul.f32 %v153, %v175
  %v194 = vmul.f32 %v154, %v179
  %v195 = vmul.f32 %v155, %v183
  %v196 = vmul.f32 %v156, %v187
  %s197 = scalar_lea.vmem %s0, 192
  %v198 = vld [vmem:[%s197] sm:$0xff]
  %v199 = vld [vmem:[%s197 + $0x8] sm:$0xff]
  %v200 = vld [vmem:[%s197 + $0x10] sm:$0xff]
  %v201 = vld [vmem:[%s197 + $0x18] sm:$0xff]
  %v202 = vld [vmem:[%s197 + $0x20] sm:$0xff]
  %v203 = vld [vmem:[%s197 + $0x28] sm:$0xff]
  %v204 = vld [vmem:[%s197 + $0x30] sm:$0xff]
  %v205 = vld [vmem:[%s197 + $0x38] sm:$0xff]
  %206 = vset.pattern.permute.xlu0 3
  %207 = vperm.xlu0 %206, %v27
  %v208 = vpop.permute.xlu0 %207
  %210 = vset.pattern.permute.xlu0 3
  %211 = vperm.xlu0 %210, %v28
  %v212 = vpop.permute.xlu0 %211
  %214 = vset.pattern.permute.xlu0 3
  %215 = vperm.xlu0 %214, %v29
  %v216 = vpop.permute.xlu0 %215
  %218 = vset.pattern.permute.xlu0 3
  %219 = vperm.xlu0 %218, %v30
  %v220 = vpop.permute.xlu0 %219
  %222 = vset.pattern.permute.xlu0 3
  %223 = vperm.xlu0 %222, %v31
  %v224 = vpop.permute.xlu0 %223
  %226 = vset.pattern.permute.xlu0 3
  %227 = vperm.xlu0 %226, %v32
  %v228 = vpop.permute.xlu0 %227
  %230 = vset.pattern.permute.xlu0 3
  %231 = vperm.xlu0 %230, %v33
  %v232 = vpop.permute.xlu0 %231
  %234 = vset.pattern.permute.xlu0 3
  %235 = vperm.xlu0 %234, %v34
  %v236 = vpop.permute.xlu0 %235
  %v238 = vmul.f32 %v198, %v208
  %v239 = vmul.f32 %v199, %v212
  %v240 = vmul.f32 %v200, %v216
  %v241 = vmul.f32 %v201, %v220
  %v242 = vmul.f32 %v202, %v224
  %v243 = vmul.f32 %v203, %v228
  %v244 = vmul.f32 %v204, %v232
  %v245 = vmul.f32 %v205, %v236
  %v246 = vadd.f32 %v189, %v238
  %v247 = vadd.f32 %v190, %v239
  %v248 = vadd.f32 %v191, %v240
  %v249 = vadd.f32 %v192, %v241
  %v250 = vadd.f32 %v193, %v242
  %v251 = vadd.f32 %v194, %v243
  %v252 = vadd.f32 %v195, %v244
  %v253 = vadd.f32 %v196, %v245
  %v254 = vadd.f32 %v140, %v246
  %v255 = vadd.f32 %v141, %v247
  %v256 = vadd.f32 %v142, %v248
  %v257 = vadd.f32 %v143, %v249
  %v258 = vadd.f32 %v144, %v250
  %v259 = vadd.f32 %v145, %v251
  %v260 = vadd.f32 %v146, %v252
  %v261 = vadd.f32 %v147, %v253
  %s262 = scalar_lea.vmem %s0, 256
  %v263 = vld [vmem:[%s262] sm:$0xff]
  %v264 = vld [vmem:[%s262 + $0x8] sm:$0xff]
  %v265 = vld [vmem:[%s262 + $0x10] sm:$0xff]
  %v266 = vld [vmem:[%s262 + $0x18] sm:$0xff]
  %v267 = vld [vmem:[%s262 + $0x20] sm:$0xff]
  %v268 = vld [vmem:[%s262 + $0x28] sm:$0xff]
  %v269 = vld [vmem:[%s262 + $0x30] sm:$0xff]
  %v270 = vld [vmem:[%s262 + $0x38] sm:$0xff]
  %271 = vset.pattern.permute.xlu0 4
  %272 = vperm.xlu0 %271, %v27
  %v273 = vpop.permute.xlu0 %272
  %275 = vset.pattern.permute.xlu0 4
  %276 = vperm.xlu0 %275, %v28
  %v277 = vpop.permute.xlu0 %276
  %279 = vset.pattern.permute.xlu0 4
  %280 = vperm.xlu0 %279, %v29
  %v281 = vpop.permute.xlu0 %280
  %283 = vset.pattern.permute.xlu0 4
  %284 = vperm.xlu0 %283, %v30
  %v285 = vpop.permute.xlu0 %284
  %287 = vset.pattern.permute.xlu0 4
  %288 = vperm.xlu0 %287, %v31
  %v289 = vpop.permute.xlu0 %288
  %291 = vset.pattern.permute.xlu0 4
  %292 = vperm.xlu0 %291, %v32
  %v293 = vpop.permute.xlu0 %292
  %295 = vset.pattern.permute.xlu0 4
  %296 = vperm.xlu0 %295, %v33
  %v297 = vpop.permute.xlu0 %296
  %299 = vset.pattern.permute.xlu0 4
  %300 = vperm.xlu0 %299, %v34
  %v301 = vpop.permute.xlu0 %300
  %v303 = vmul.f32 %v263, %v273
  %v304 = vmul.f32 %v264, %v277
  %v305 = vmul.f32 %v265, %v281
  %v306 = vmul.f32 %v266, %v285
  %v307 = vmul.f32 %v267, %v289
  %v308 = vmul.f32 %v268, %v293
  %v309 = vmul.f32 %v269, %v297
  %v310 = vmul.f32 %v270, %v301
  %311 = vset.pattern.permute.xlu0 5
  %312 = vperm.xlu0 %311, %v27
  %v313 = vpop.permute.xlu0 %312
  %315 = vset.pattern.permute.xlu0 5
  %316 = vperm.xlu0 %315, %v28
  %v317 = vpop.permute.xlu0 %316
  %319 = vset.pattern.permute.xlu0 5
  %320 = vperm.xlu0 %319, %v29
  %v321 = vpop.permute.xlu0 %320
  %323 = vset.pattern.permute.xlu0 5
  %324 = vperm.xlu0 %323, %v30
  %v325 = vpop.permute.xlu0 %324
  %327 = vset.pattern.permute.xlu0 5
  %328 = vperm.xlu0 %327, %v31
  %v329 = vpop.permute.xlu0 %328
  %331 = vset.pattern.permute.xlu0 5
  %332 = vperm.xlu0 %331, %v32
  %v333 = vpop.permute.xlu0 %332
  %335 = vset.pattern.permute.xlu0 5
  %336 = vperm.xlu0 %335, %v33
  %v337 = vpop.permute.xlu0 %336
  %339 = vset.pattern.permute.xlu0 5
  %340 = vperm.xlu0 %339, %v34
  %v341 = vpop.permute.xlu0 %340
  %v343 = vadd.f32 %v303, %v313
  %v344 = vadd.f32 %v304, %v317
  %v345 = vadd.f32 %v305, %v321
  %v346 = vadd.f32 %v306, %v325
  %v347 = vadd.f32 %v307, %v329
  %v348 = vadd.f32 %v308, %v333
  %v349 = vadd.f32 %v309, %v337
  %v350 = vadd.f32 %v310, %v341
  %v351 = vadd.f32 %v254, %v343
  %v352 = vadd.f32 %v255, %v344
  %v353 = vadd.f32 %v256, %v345
  %v354 = vadd.f32 %v257, %v346
  %v355 = vadd.f32 %v258, %v347
  %v356 = vadd.f32 %v259, %v348
  %v357 = vadd.f32 %v260, %v349
  %v358 = vadd.f32 %v261, %v350
  %v359 = vld [vmem:[%s1] sm:$0xff]
  %v360 = vld [vmem:[%s1 + $0x8] sm:$0xff]
  %v361 = vld [vmem:[%s1 + $0x10] sm:$0xff]
  %v362 = vld [vmem:[%s1 + $0x18] sm:$0xff]
  %v363 = vld [vmem:[%s1 + $0x20] sm:$0xff]
  %v364 = vld [vmem:[%s1 + $0x28] sm:$0xff]
  %v365 = vld [vmem:[%s1 + $0x30] sm:$0xff]
  %v366 = vld [vmem:[%s1 + $0x38] sm:$0xff]
  %367 = vset.pattern.permute.xlu0 6
  %368 = vperm.xlu0 %367, %v27
  %v369 = vpop.permute.xlu0 %368
  %371 = vset.pattern.permute.xlu0 6
  %372 = vperm.xlu0 %371, %v28
  %v373 = vpop.permute.xlu0 %372
  %375 = vset.pattern.permute.xlu0 6
  %376 = vperm.xlu0 %375, %v29
  %v377 = vpop.permute.xlu0 %376
  %379 = vset.pattern.permute.xlu0 6
  %380 = vperm.xlu0 %379, %v30
  %v381 = vpop.permute.xlu0 %380
  %383 = vset.pattern.permute.xlu0 6
  %384 = vperm.xlu0 %383, %v31
  %v385 = vpop.permute.xlu0 %384
  %387 = vset.pattern.permute.xlu0 6
  %388 = vperm.xlu0 %387, %v32
  %v389 = vpop.permute.xlu0 %388
  %391 = vset.pattern.permute.xlu0 6
  %392 = vperm.xlu0 %391, %v33
  %v393 = vpop.permute.xlu0 %392
  %395 = vset.pattern.permute.xlu0 6
  %396 = vperm.xlu0 %395, %v34
  %v397 = vpop.permute.xlu0 %396
  %vm399 = vcmask 523264
  %v401 = vsel %vm399, %v359, 0
  %v404 = vsel %vm399, %v360, 0
  %v407 = vsel %vm399, %v361, 0
  %v410 = vsel %vm399, %v362, 0
  %v413 = vsel %vm399, %v363, 0
  %v416 = vsel %vm399, %v364, 0
  %v419 = vsel %vm399, %v365, 0
  %v422 = vsel %vm399, %v366, 0
  %424 = vmatprep.subr.mxu0 0.0
  %425 = vmatpush1.msra.mxu0 %v351
  %426 = vmatprep.subr.mxu0 0.0
  %427 = vmatpush1.msra.mxu0 %v352
  %428 = vmatprep.subr.mxu0 0.0
  %429 = vmatpush1.msra.mxu0 %v353
  %430 = vmatprep.subr.mxu0 0.0
  %431 = vmatpush1.msra.mxu0 %v354
  %432 = vmatprep.subr.mxu0 0.0
  %433 = vmatpush1.msra.mxu0 %v355
  %434 = vmatprep.subr.mxu0 0.0
  %435 = vmatpush1.msra.mxu0 %v356
  %436 = vmatprep.subr.mxu0 0.0
  %437 = vmatpush1.msra.mxu0 %v357
  %438 = vmatprep.subr.mxu0 0.0
  %439 = vmatpush1.msra.mxu0 %v358
  %440 = vmatprep.subr.mxu0 0.0
  %441 = vmatpush1.msra.mxu0 0.0
  %442 = vmatprep.subr.mxu0 0.0
  %443 = vmatpush1.msra.mxu0 0.0
  %444 = vmatprep.subr.mxu0 0.0
  %445 = vmatpush1.msra.mxu0 0.0
  %446 = vmatprep.subr.mxu0 0.0
  %447 = vmatpush1.msra.mxu0 0.0
  %448 = vmatprep.subr.mxu0 0.0
  %449 = vmatpush1.msra.mxu0 0.0
  %450 = vmatprep.subr.mxu0 0.0
  %451 = vmatpush1.msra.mxu0 0.0
  %452 = vmatprep.subr.mxu0 0.0
  %453 = vmatpush1.msra.mxu0 0.0
  %454 = vmatprep.subr.mxu0 0.0
  %455 = vmatpush1.msra.mxu0 0.0
  %456 = vmatprep.subr.mxu0 0.0
  %457 = vmatpush1.msra.mxu0 0.0
  %458 = vmatprep.subr.mxu0 0.0
  %459 = vmatpush1.msra.mxu0 0.0
  %460 = vmatprep.subr.mxu0 0.0
  %461 = vmatpush1.msra.mxu0 0.0
  %462 = vmatprep.subr.mxu0 0.0
  %463 = vmatpush1.msra.mxu0 0.0
  %464 = vmatprep.subr.mxu0 0.0
  %465 = vmatpush1.msra.mxu0 0.0
  %466 = vmatprep.subr.mxu0 0.0
  %467 = vmatpush1.msra.mxu0 0.0
  %468 = vmatprep.subr.mxu0 0.0
  %469 = vmatpush1.msra.mxu0 0.0
  %470 = vmatprep.subr.mxu0 0.0
  %471 = vmatpush1.msra.mxu0 0.0
  %472 = vmatprep.subr.mxu0 0.0
  %473 = vmatpush1.msra.mxu0 0.0
  %474 = vmatprep.subr.mxu0 0.0
  %475 = vmatpush1.msra.mxu0 0.0
  %476 = vmatprep.subr.mxu0 0.0
  %477 = vmatpush1.msra.mxu0 0.0
  %478 = vmatprep.subr.mxu0 0.0
  %479 = vmatpush1.msra.mxu0 0.0
  %480 = vmatprep.subr.mxu0 0.0
  %481 = vmatpush1.msra.mxu0 0.0
  %482 = vmatprep.subr.mxu0 0.0
  %483 = vmatpush1.msra.mxu0 0.0
  %484 = vmatprep.subr.mxu0 0.0
  %485 = vmatpush1.msra.mxu0 0.0
  %486 = vmatprep.subr.mxu0 0.0
  %487 = vmatpush1.msra.mxu0 0.0
  %488 = vmatprep.mubr.f32.mxu0 0.0
  %489 = vmatmul.mubr.f32.gmra.mrb[0].mxu0 %v401
  %v490 = vpop.f32.mrb[0].mxu0
  %v491 = vadd.f32 %v369, %v490
  %v492 = vpop.f32.mrb[0].mxu0
  %493 = vmatprep.mubr.f32.mxu0 0.0
  %494 = vmatmul.mubr.f32.gmra.mrb[0].mxu0 %v404
  %v495 = vpop.f32.mrb[0].mxu0
  %v496 = vadd.f32 %v373, %v495
  %v497 = vpop.f32.mrb[0].mxu0
  %498 = vmatprep.mubr.f32.mxu0 0.0
  %499 = vmatmul.mubr.f32.gmra.mrb[0].mxu0 %v407
  %v500 = vpop.f32.mrb[0].mxu0
  %v501 = vadd.f32 %v377, %v500
  %v502 = vpop.f32.mrb[0].mxu0
  %503 = vmatprep.mubr.f32.mxu0 0.0
  %504 = vmatmul.mubr.f32.gmra.mrb[0].mxu0 %v410
  %v505 = vpop.f32.mrb[0].mxu0
  %v506 = vadd.f32 %v381, %v505
  %v507 = vpop.f32.mrb[0].mxu0
  %508 = vmatprep.mubr.f32.mxu0 0.0
  %509 = vmatmul.mubr.f32.gmra.mrb[0].mxu0 %v413
  %v510 = vpop.f32.mrb[0].mxu0
  %v511 = vadd.f32 %v385, %v510
  %v512 = vpop.f32.mrb[0].mxu0
  %513 = vmatprep.mubr.f32.mxu0 0.0
  %514 = vmatmul.mubr.f32.gmra.mrb[0].mxu0 %v416
  %v515 = vpop.f32.mrb[0].mxu0
  %v516 = vadd.f32 %v389, %v515
  %v517 = vpop.f32.mrb[0].mxu0
  %518 = vmatprep.mubr.f32.mxu0 0.0
  %519 = vmatmul.mubr.f32.gmra.mrb[0].mxu0 %v419
  %v520 = vpop.f32.mrb[0].mxu0
  %v521 = vadd.f32 %v393, %v520
  %v522 = vpop.f32.mrb[0].mxu0
  %523 = vmatprep.mubr.f32.mxu0 0.0
  %524 = vmatmul.mubr.f32.gmra.mrb[0].mxu0 %v422
  %v525 = vpop.f32.mrb[0].mxu0
  %v526 = vadd.f32 %v397, %v525
  %v527 = vpop.f32.mrb[0].mxu0
  %528 = vdwg.mxu0
  %vm529 = vcmask 392192
  %v530 = vsel %vm529, %v491, 0.0
  %531 = vadd.xlane.f32.xlu0 %v530
  %v532 = vpop.xlane.xlu0 %531
  %v533 = vsel %vm529, %v496, 0.0
  %534 = vadd.xlane.f32.xlu0 %v533
  %v535 = vpop.xlane.xlu0 %534
  %v536 = vsel %vm529, %v501, 0.0
  %537 = vadd.xlane.f32.xlu0 %v536
  %v538 = vpop.xlane.xlu0 %537
  %v539 = vsel %vm529, %v506, 0.0
  %540 = vadd.xlane.f32.xlu0 %v539
  %v541 = vpop.xlane.xlu0 %540
  %v542 = vsel %vm529, %v511, 0.0
  %543 = vadd.xlane.f32.xlu0 %v542
  %v544 = vpop.xlane.xlu0 %543
  %v545 = vsel %vm529, %v516, 0.0
  %546 = vadd.xlane.f32.xlu0 %v545
  %v547 = vpop.xlane.xlu0 %546
  %v548 = vsel %vm529, %v521, 0.0
  %549 = vadd.xlane.f32.xlu0 %v548
  %v550 = vpop.xlane.xlu0 %549
  %v551 = vsel %vm529, %v526, 0.0
  %552 = vadd.xlane.f32.xlu0 %v551
  %v553 = vpop.xlane.xlu0 %552
  %v554 = vmul.f32 %v491, %v491
  %v555 = vmul.f32 %v496, %v496
  %v556 = vmul.f32 %v501, %v501
  %v557 = vmul.f32 %v506, %v506
  %v558 = vmul.f32 %v511, %v511
  %v559 = vmul.f32 %v516, %v516
  %v560 = vmul.f32 %v521, %v521
  %v561 = vmul.f32 %v526, %v526
  %v562 = vsel %vm529, %v554, 0.0
  %563 = vadd.xlane.f32.xlu0 %v562
  %v564 = vpop.xlane.xlu0 %563
  %v565 = vsel %vm529, %v555, 0.0
  %566 = vadd.xlane.f32.xlu0 %v565
  %v567 = vpop.xlane.xlu0 %566
  %v568 = vsel %vm529, %v556, 0.0
  %569 = vadd.xlane.f32.xlu0 %v568
  %v570 = vpop.xlane.xlu0 %569
  %v571 = vsel %vm529, %v557, 0.0
  %572 = vadd.xlane.f32.xlu0 %v571
  %v573 = vpop.xlane.xlu0 %572
  %v574 = vsel %vm529, %v558, 0.0
  %575 = vadd.xlane.f32.xlu0 %v574
  %v576 = vpop.xlane.xlu0 %575
  %v577 = vsel %vm529, %v559, 0.0
  %578 = vadd.xlane.f32.xlu0 %v577
  %v579 = vpop.xlane.xlu0 %578
  %v580 = vsel %vm529, %v560, 0.0
  %581 = vadd.xlane.f32.xlu0 %v580
  %v582 = vpop.xlane.xlu0 %581
  %v583 = vsel %vm529, %v561, 0.0
  %584 = vadd.xlane.f32.xlu0 %v583
  %v585 = vpop.xlane.xlu0 %584
  %v586 = vmul.f32 %v532, 0.020833334
  %v587 = vmul.f32 %v535, 0.020833334
  %v588 = vmul.f32 %v538, 0.020833334
  %v589 = vmul.f32 %v541, 0.020833334
  %v590 = vmul.f32 %v544, 0.020833334
  %v591 = vmul.f32 %v547, 0.020833334
  %v592 = vmul.f32 %v550, 0.020833334
  %v593 = vmul.f32 %v553, 0.020833334
  %v594 = vmul.f32 %v564, 0.020833334
  %v595 = vmul.f32 %v567, 0.020833334
  %v596 = vmul.f32 %v570, 0.020833334
  %v597 = vmul.f32 %v573, 0.020833334
  %v598 = vmul.f32 %v576, 0.020833334
  %v599 = vmul.f32 %v579, 0.020833334
  %v600 = vmul.f32 %v582, 0.020833334
  %v601 = vmul.f32 %v585, 0.020833334
  %v602 = vmul.f32 %v586, %v586
  %v603 = vmul.f32 %v587, %v587
  %v604 = vmul.f32 %v588, %v588
  %v605 = vmul.f32 %v589, %v589
  %v606 = vmul.f32 %v590, %v590
  %v607 = vmul.f32 %v591, %v591
  %v608 = vmul.f32 %v592, %v592
  %v609 = vmul.f32 %v593, %v593
  %v610 = vsub.f32 %v594, %v602
  %v611 = vsub.f32 %v595, %v603
  %v612 = vsub.f32 %v596, %v604
  %v613 = vsub.f32 %v597, %v605
  %v614 = vsub.f32 %v598, %v606
  %v615 = vsub.f32 %v599, %v607
  %v616 = vsub.f32 %v600, %v608
  %v617 = vsub.f32 %v601, %v609
  %v618 = vadd.f32 %v610, 1e-05
  %v619 = vadd.f32 %v611, 1e-05
  %v620 = vadd.f32 %v612, 1e-05
  %v621 = vadd.f32 %v613, 1e-05
  %v622 = vadd.f32 %v614, 1e-05
  %v623 = vadd.f32 %v615, 1e-05
  %v624 = vadd.f32 %v616, 1e-05
  %v625 = vadd.f32 %v617, 1e-05
  %v626 = vrsqrt.pop %v618
  %v627 = vrsqrt.pop %v619
  %v628 = vrsqrt.pop %v620
  %v629 = vrsqrt.pop %v621
  %v630 = vrsqrt.pop %v622
  %v631 = vrsqrt.pop %v623
  %v632 = vrsqrt.pop %v624
  %v633 = vrsqrt.pop %v625
  %v634 = vmul.f32 %v27, %v626
  %v635 = vmul.f32 %v28, %v627
  %v636 = vmul.f32 %v29, %v628
  %v637 = vmul.f32 %v30, %v629
  %v638 = vmul.f32 %v31, %v630
  %v639 = vmul.f32 %v32, %v631
  %v640 = vmul.f32 %v33, %v632
  %v641 = vmul.f32 %v34, %v633
  %v642 = vmul.f32 %v634, %v586
  %v643 = vmul.f32 %v635, %v587
  %v644 = vmul.f32 %v636, %v588
  %v645 = vmul.f32 %v637, %v589
  %v646 = vmul.f32 %v638, %v590
  %v647 = vmul.f32 %v639, %v591
  %v648 = vmul.f32 %v640, %v592
  %v649 = vmul.f32 %v641, %v593
  %658 = vrot.lane.b32.xlu0 %v642, 1
  %v659 = vpop.permute.xlu0 %658
  %660 = vrot.lane.b32.xlu0 %v643, 1
  %v661 = vpop.permute.xlu0 %660
  %662 = vrot.lane.b32.xlu0 %v644, 1
  %v663 = vpop.permute.xlu0 %662
  %664 = vrot.lane.b32.xlu0 %v645, 1
  %v665 = vpop.permute.xlu0 %664
  %666 = vrot.lane.b32.xlu0 %v646, 1
  %v667 = vpop.permute.xlu0 %666
  %668 = vrot.lane.b32.xlu0 %v647, 1
  %v669 = vpop.permute.xlu0 %668
  %670 = vrot.lane.b32.xlu0 %v648, 1
  %v671 = vpop.permute.xlu0 %670
  %672 = vrot.lane.b32.xlu0 %v649, 1
  %v673 = vpop.permute.xlu0 %672
  %v682 = vsub.f32 %v27, %v659
  %v683 = vsub.f32 %v28, %v661
  %v684 = vsub.f32 %v29, %v663
  %v685 = vsub.f32 %v30, %v665
  %v686 = vsub.f32 %v31, %v667
  %v687 = vsub.f32 %v32, %v669
  %v688 = vsub.f32 %v33, %v671
  %v689 = vsub.f32 %v34, %v673
  %691 = vset.pattern.permute.xlu0 7
  %692 = vperm.xlu0 %691, %v634
  %v693 = vpop.permute.xlu0 %692
  %696 = vset.pattern.permute.xlu0 7
  %697 = vperm.xlu0 %696, %v635
  %v698 = vpop.permute.xlu0 %697
  %701 = vset.pattern.permute.xlu0 7
  %702 = vperm.xlu0 %701, %v636
  %v703 = vpop.permute.xlu0 %702
  %706 = vset.pattern.permute.xlu0 7
  %707 = vperm.xlu0 %706, %v637
  %v708 = vpop.permute.xlu0 %707
  %711 = vset.pattern.permute.xlu0 7
  %712 = vperm.xlu0 %711, %v638
  %v713 = vpop.permute.xlu0 %712
  %716 = vset.pattern.permute.xlu0 7
  %717 = vperm.xlu0 %716, %v639
  %v718 = vpop.permute.xlu0 %717
  %721 = vset.pattern.permute.xlu0 7
  %722 = vperm.xlu0 %721, %v640
  %v723 = vpop.permute.xlu0 %722
  %726 = vset.pattern.permute.xlu0 7
  %727 = vperm.xlu0 %726, %v641
  %v728 = vpop.permute.xlu0 %727
  %v730 = vmul.f32 %v491, %v693
  %v731 = vmul.f32 %v496, %v698
  %v732 = vmul.f32 %v501, %v703
  %v733 = vmul.f32 %v506, %v708
  %v734 = vmul.f32 %v511, %v713
  %v735 = vmul.f32 %v516, %v718
  %v736 = vmul.f32 %v521, %v723
  %v737 = vmul.f32 %v526, %v728
  %739 = vset.pattern.permute.xlu0 8
  %740 = vperm.xlu0 %739, %v682
  %v741 = vpop.permute.xlu0 %740
  %744 = vset.pattern.permute.xlu0 8
  %745 = vperm.xlu0 %744, %v683
  %v746 = vpop.permute.xlu0 %745
  %749 = vset.pattern.permute.xlu0 8
  %750 = vperm.xlu0 %749, %v684
  %v751 = vpop.permute.xlu0 %750
  %754 = vset.pattern.permute.xlu0 8
  %755 = vperm.xlu0 %754, %v685
  %v756 = vpop.permute.xlu0 %755
  %759 = vset.pattern.permute.xlu0 8
  %760 = vperm.xlu0 %759, %v686
  %v761 = vpop.permute.xlu0 %760
  %764 = vset.pattern.permute.xlu0 8
  %765 = vperm.xlu0 %764, %v687
  %v766 = vpop.permute.xlu0 %765
  %769 = vset.pattern.permute.xlu0 8
  %770 = vperm.xlu0 %769, %v688
  %v771 = vpop.permute.xlu0 %770
  %774 = vset.pattern.permute.xlu0 8
  %775 = vperm.xlu0 %774, %v689
  %v776 = vpop.permute.xlu0 %775
  %v778 = vadd.f32 %v730, %v741
  %v779 = vadd.f32 %v731, %v746
  %v780 = vadd.f32 %v732, %v751
  %v781 = vadd.f32 %v733, %v756
  %v782 = vadd.f32 %v734, %v761
  %v783 = vadd.f32 %v735, %v766
  %v784 = vadd.f32 %v736, %v771
  %v785 = vadd.f32 %v737, %v776
  %v786 = vmax.f32 %v778, 0.0
  %v787 = vmax.f32 %v779, 0.0
  %v788 = vmax.f32 %v780, 0.0
  %v789 = vmax.f32 %v781, 0.0
  %v790 = vmax.f32 %v782, 0.0
  %v791 = vmax.f32 %v783, 0.0
  %v792 = vmax.f32 %v784, 0.0
  %v793 = vmax.f32 %v785, 0.0
  %v794 = vld [vmem:[%s4] sm:$0xff]
  %v795 = vld [vmem:[%s4 + $0x8] sm:$0xff]
  %v796 = vld [vmem:[%s4 + $0x10] sm:$0xff]
  %v797 = vld [vmem:[%s4 + $0x18] sm:$0xff]
  %v798 = vld [vmem:[%s4 + $0x20] sm:$0xff]
  %v799 = vld [vmem:[%s4 + $0x28] sm:$0xff]
  %v801 = vsel %vm529, %v786, 0
  %v804 = vsel %vm529, %v787, 0
  %v807 = vsel %vm529, %v788, 0
  %v810 = vsel %vm529, %v789, 0
  %v813 = vsel %vm529, %v790, 0
  %v816 = vsel %vm529, %v791, 0
  %v819 = vsel %vm529, %v792, 0
  %v822 = vsel %vm529, %v793, 0
  %824 = vmatprep.subr.mxu0 0.0
  %825 = vmatpush1.msra.mxu0 %v794
  %826 = vmatprep.subr.mxu0 0.0
  %827 = vmatpush1.msra.mxu0 %v795
  %828 = vmatprep.subr.mxu0 0.0
  %829 = vmatpush1.msra.mxu0 %v796
  %830 = vmatprep.subr.mxu0 0.0
  %831 = vmatpush1.msra.mxu0 %v797
  %832 = vmatprep.subr.mxu0 0.0
  %833 = vmatpush1.msra.mxu0 %v798
  %834 = vmatprep.subr.mxu0 0.0
  %835 = vmatpush1.msra.mxu0 %v799
  %836 = vmatprep.subr.mxu0 0.0
  %837 = vmatpush1.msra.mxu0 0.0
  %838 = vmatprep.subr.mxu0 0.0
  %839 = vmatpush1.msra.mxu0 0.0
  %840 = vmatprep.subr.mxu0 0.0
  %841 = vmatpush1.msra.mxu0 0.0
  %842 = vmatprep.subr.mxu0 0.0
  %843 = vmatpush1.msra.mxu0 0.0
  %844 = vmatprep.subr.mxu0 0.0
  %845 = vmatpush1.msra.mxu0 0.0
  %846 = vmatprep.subr.mxu0 0.0
  %847 = vmatpush1.msra.mxu0 0.0
  %848 = vmatprep.subr.mxu0 0.0
  %849 = vmatpush1.msra.mxu0 0.0
  %850 = vmatprep.subr.mxu0 0.0
  %851 = vmatpush1.msra.mxu0 0.0
  %852 = vmatprep.subr.mxu0 0.0
  %853 = vmatpush1.msra.mxu0 0.0
  %854 = vmatprep.subr.mxu0 0.0
  %855 = vmatpush1.msra.mxu0 0.0
  %856 = vmatprep.subr.mxu0 0.0
  %857 = vmatpush1.msra.mxu0 0.0
  %858 = vmatprep.subr.mxu0 0.0
  %859 = vmatpush1.msra.mxu0 0.0
  %860 = vmatprep.subr.mxu0 0.0
  %861 = vmatpush1.msra.mxu0 0.0
  %862 = vmatprep.subr.mxu0 0.0
  %863 = vmatpush1.msra.mxu0 0.0
  %864 = vmatprep.subr.mxu0 0.0
  %865 = vmatpush1.msra.mxu0 0.0
  %866 = vmatprep.subr.mxu0 0.0
  %867 = vmatpush1.msra.mxu0 0.0
  %868 = vmatprep.subr.mxu0 0.0
  %869 = vmatpush1.msra.mxu0 0.0
  %870 = vmatprep.subr.mxu0 0.0
  %871 = vmatpush1.msra.mxu0 0.0
  %872 = vmatprep.subr.mxu0 0.0
  %873 = vmatpush1.msra.mxu0 0.0
  %874 = vmatprep.subr.mxu0 0.0
  %875 = vmatpush1.msra.mxu0 0.0
  %876 = vmatprep.subr.mxu0 0.0
  %877 = vmatpush1.msra.mxu0 0.0
  %878 = vmatprep.subr.mxu0 0.0
  %879 = vmatpush1.msra.mxu0 0.0
  %880 = vmatprep.subr.mxu0 0.0
  %881 = vmatpush1.msra.mxu0 0.0
  %882 = vmatprep.subr.mxu0 0.0
  %883 = vmatpush1.msra.mxu0 0.0
  %884 = vmatprep.subr.mxu0 0.0
  %885 = vmatpush1.msra.mxu0 0.0
  %886 = vmatprep.subr.mxu0 0.0
  %887 = vmatpush1.msra.mxu0 0.0
  %888 = vmatprep.mubr.f32.mxu0 0.0
  %889 = vmatmul.mubr.f32.gmra.mrb[0].mxu0 %v801
  %v890 = vpop.f32.mrb[0].mxu0
  %v891 = vadd.f32 0.0, %v890
  %v892 = vpop.f32.mrb[0].mxu0
  %893 = vmatprep.mubr.f32.mxu0 0.0
  %894 = vmatmul.mubr.f32.gmra.mrb[0].mxu0 %v804
  %v895 = vpop.f32.mrb[0].mxu0
  %v896 = vadd.f32 0.0, %v895
  %v897 = vpop.f32.mrb[0].mxu0
  %898 = vmatprep.mubr.f32.mxu0 0.0
  %899 = vmatmul.mubr.f32.gmra.mrb[0].mxu0 %v807
  %v900 = vpop.f32.mrb[0].mxu0
  %v901 = vadd.f32 0.0, %v900
  %v902 = vpop.f32.mrb[0].mxu0
  %903 = vmatprep.mubr.f32.mxu0 0.0
  %904 = vmatmul.mubr.f32.gmra.mrb[0].mxu0 %v810
  %v905 = vpop.f32.mrb[0].mxu0
  %v906 = vadd.f32 0.0, %v905
  %v907 = vpop.f32.mrb[0].mxu0
  %908 = vmatprep.mubr.f32.mxu0 0.0
  %909 = vmatmul.mubr.f32.gmra.mrb[0].mxu0 %v813
  %v910 = vpop.f32.mrb[0].mxu0
  %v911 = vadd.f32 0.0, %v910
  %v912 = vpop.f32.mrb[0].mxu0
  %913 = vmatprep.mubr.f32.mxu0 0.0
  %914 = vmatmul.mubr.f32.gmra.mrb[0].mxu0 %v816
  %v915 = vpop.f32.mrb[0].mxu0
  %v916 = vadd.f32 0.0, %v915
  %v917 = vpop.f32.mrb[0].mxu0
  %918 = vmatprep.mubr.f32.mxu0 0.0
  %919 = vmatmul.mubr.f32.gmra.mrb[0].mxu0 %v819
  %v920 = vpop.f32.mrb[0].mxu0
  %v921 = vadd.f32 0.0, %v920
  %v922 = vpop.f32.mrb[0].mxu0
  %923 = vmatprep.mubr.f32.mxu0 0.0
  %924 = vmatmul.mubr.f32.gmra.mrb[0].mxu0 %v822
  %v925 = vpop.f32.mrb[0].mxu0
  %v926 = vadd.f32 0.0, %v925
  %v927 = vpop.f32.mrb[0].mxu0
  %928 = vdwg.mxu0
  %vm929 = vcmask 195584
  %v930 = vsel %vm929, %v786, -inf
  %931 = vmax.xlane.f32.xlu0 %v930
  %v932 = vpop.xlane.xlu0 %931
  %v933 = vsel %vm929, %v787, -inf
  %934 = vmax.xlane.f32.xlu0 %v933
  %v935 = vpop.xlane.xlu0 %934
  %v936 = vsel %vm929, %v788, -inf
  %937 = vmax.xlane.f32.xlu0 %v936
  %v938 = vpop.xlane.xlu0 %937
  %v939 = vsel %vm929, %v789, -inf
  %940 = vmax.xlane.f32.xlu0 %v939
  %v941 = vpop.xlane.xlu0 %940
  %v942 = vsel %vm929, %v790, -inf
  %943 = vmax.xlane.f32.xlu0 %v942
  %v944 = vpop.xlane.xlu0 %943
  %v945 = vsel %vm929, %v791, -inf
  %946 = vmax.xlane.f32.xlu0 %v945
  %v947 = vpop.xlane.xlu0 %946
  %v948 = vsel %vm929, %v792, -inf
  %949 = vmax.xlane.f32.xlu0 %v948
  %v950 = vpop.xlane.xlu0 %949
  %v951 = vsel %vm929, %v793, -inf
  %952 = vmax.xlane.f32.xlu0 %v951
  %v953 = vpop.xlane.xlu0 %952
  %vm954 = vcmask 392384
  %v955 = vsel %vm954, %v786, -inf
  %956 = vmax.xlane.f32.xlu0 %v955
  %v957 = vpop.xlane.xlu0 %956
  %v958 = vsel %vm954, %v787, -inf
  %959 = vmax.xlane.f32.xlu0 %v958
  %v960 = vpop.xlane.xlu0 %959
  %v961 = vsel %vm954, %v788, -inf
  %962 = vmax.xlane.f32.xlu0 %v961
  %v963 = vpop.xlane.xlu0 %962
  %v964 = vsel %vm954, %v789, -inf
  %965 = vmax.xlane.f32.xlu0 %v964
  %v966 = vpop.xlane.xlu0 %965
  %v967 = vsel %vm954, %v790, -inf
  %968 = vmax.xlane.f32.xlu0 %v967
  %v969 = vpop.xlane.xlu0 %968
  %v970 = vsel %vm954, %v791, -inf
  %971 = vmax.xlane.f32.xlu0 %v970
  %v972 = vpop.xlane.xlu0 %971
  %v973 = vsel %vm954, %v792, -inf
  %974 = vmax.xlane.f32.xlu0 %v973
  %v975 = vpop.xlane.xlu0 %974
  %v976 = vsel %vm954, %v793, -inf
  %977 = vmax.xlane.f32.xlu0 %v976
  %v978 = vpop.xlane.xlu0 %977
  %vm979 = vcmask 7168
  %v980 = vsel %vm979, %v932, %v957
  %v981 = vsel %vm979, %v935, %v960
  %v982 = vsel %vm979, %v938, %v963
  %v983 = vsel %vm979, %v941, %v966
  %v984 = vsel %vm979, %v944, %v969
  %v985 = vsel %vm979, %v947, %v972
  %v986 = vsel %vm979, %v950, %v975
  %v987 = vsel %vm979, %v953, %v978
  %s988 = sld [smem:[#allocation2]]
  %v989 = vld [vmem:[%s3] sm:$0xff]
  %v990 = vld [vmem:[%s3 + $0x8] sm:$0xff]
  %v991 = vld [vmem:[%s3 + $0x10] sm:$0xff]
  %v992 = vld [vmem:[%s3 + $0x18] sm:$0xff]
  %v993 = vstv %s988
  %v995 = vsel %vm399, %v989, 0
  %v998 = vsel %vm399, %v990, 0
  %v1001 = vsel %vm399, %v991, 0
  %v1004 = vsel %vm399, %v992, 0
  %1006 = vmatprep.subr.mxu0 0.0
  %1007 = vmatpush1.msra.mxu0 %v891
  %1008 = vmatprep.subr.mxu0 0.0
  %1009 = vmatpush1.msra.mxu0 %v896
  %1010 = vmatprep.subr.mxu0 0.0
  %1011 = vmatpush1.msra.mxu0 %v901
  %1012 = vmatprep.subr.mxu0 0.0
  %1013 = vmatpush1.msra.mxu0 %v906
  %1014 = vmatprep.subr.mxu0 0.0
  %1015 = vmatpush1.msra.mxu0 %v911
  %1016 = vmatprep.subr.mxu0 0.0
  %1017 = vmatpush1.msra.mxu0 %v916
  %1018 = vmatprep.subr.mxu0 0.0
  %1019 = vmatpush1.msra.mxu0 %v921
  %1020 = vmatprep.subr.mxu0 0.0
  %1021 = vmatpush1.msra.mxu0 %v926
  %1022 = vmatprep.subr.mxu0 0.0
  %1023 = vmatpush1.msra.mxu0 0.0
  %1024 = vmatprep.subr.mxu0 0.0
  %1025 = vmatpush1.msra.mxu0 0.0
  %1026 = vmatprep.subr.mxu0 0.0
  %1027 = vmatpush1.msra.mxu0 0.0
  %1028 = vmatprep.subr.mxu0 0.0
  %1029 = vmatpush1.msra.mxu0 0.0
  %1030 = vmatprep.subr.mxu0 0.0
  %1031 = vmatpush1.msra.mxu0 0.0
  %1032 = vmatprep.subr.mxu0 0.0
  %1033 = vmatpush1.msra.mxu0 0.0
  %1034 = vmatprep.subr.mxu0 0.0
  %1035 = vmatpush1.msra.mxu0 0.0
  %1036 = vmatprep.subr.mxu0 0.0
  %1037 = vmatpush1.msra.mxu0 0.0
  %1038 = vmatprep.subr.mxu0 0.0
  %1039 = vmatpush1.msra.mxu0 0.0
  %1040 = vmatprep.subr.mxu0 0.0
  %1041 = vmatpush1.msra.mxu0 0.0
  %1042 = vmatprep.subr.mxu0 0.0
  %1043 = vmatpush1.msra.mxu0 0.0
  %1044 = vmatprep.subr.mxu0 0.0
  %1045 = vmatpush1.msra.mxu0 0.0
  %1046 = vmatprep.subr.mxu0 0.0
  %1047 = vmatpush1.msra.mxu0 0.0
  %1048 = vmatprep.subr.mxu0 0.0
  %1049 = vmatpush1.msra.mxu0 0.0
  %1050 = vmatprep.subr.mxu0 0.0
  %1051 = vmatpush1.msra.mxu0 0.0
  %1052 = vmatprep.subr.mxu0 0.0
  %1053 = vmatpush1.msra.mxu0 0.0
  %1054 = vmatprep.subr.mxu0 0.0
  %1055 = vmatpush1.msra.mxu0 0.0
  %1056 = vmatprep.subr.mxu0 0.0
  %1057 = vmatpush1.msra.mxu0 0.0
  %1058 = vmatprep.subr.mxu0 0.0
  %1059 = vmatpush1.msra.mxu0 0.0
  %1060 = vmatprep.subr.mxu0 0.0
  %1061 = vmatpush1.msra.mxu0 0.0
  %1062 = vmatprep.subr.mxu0 0.0
  %1063 = vmatpush1.msra.mxu0 0.0
  %1064 = vmatprep.subr.mxu0 0.0
  %1065 = vmatpush1.msra.mxu0 0.0
  %1066 = vmatprep.subr.mxu0 0.0
  %1067 = vmatpush1.msra.mxu0 0.0
  %1068 = vmatprep.subr.mxu0 0.0
  %1069 = vmatpush1.msra.mxu0 0.0
  %1070 = vmatprep.mubr.f32.mxu0 0.0
  %1071 = vmatmul.mubr.f32.gmra.mrb[0].mxu0 %v995
  %v1072 = vpop.f32.mrb[0].mxu0
  %v1073 = vadd.f32 %v993, %v1072
  %v1074 = vpop.f32.mrb[0].mxu0
  %1075 = vmatprep.mubr.f32.mxu0 0.0
  %1076 = vmatmul.mubr.f32.gmra.mrb[0].mxu0 %v998
  %v1077 = vpop.f32.mrb[0].mxu0
  %v1078 = vadd.f32 %v993, %v1077
  %v1079 = vpop.f32.mrb[0].mxu0
  %1080 = vmatprep.mubr.f32.mxu0 0.0
  %1081 = vmatmul.mubr.f32.gmra.mrb[0].mxu0 %v1001
  %v1082 = vpop.f32.mrb[0].mxu0
  %v1083 = vadd.f32 %v993, %v1082
  %v1084 = vpop.f32.mrb[0].mxu0
  %1085 = vmatprep.mubr.f32.mxu0 0.0
  %1086 = vmatmul.mubr.f32.gmra.mrb[0].mxu0 %v1004
  %v1087 = vpop.f32.mrb[0].mxu0
  %v1088 = vadd.f32 %v993, %v1087
  %v1089 = vpop.f32.mrb[0].mxu0
  %1090 = vdwg.mxu0
  %1091 = vmatprep.subr.mxu0 0.0
  %1092 = vmatpush1.msra.mxu0 %v980
  %1093 = vmatprep.subr.mxu0 0.0
  %1094 = vmatpush1.msra.mxu0 %v981
  %1095 = vmatprep.subr.mxu0 0.0
  %1096 = vmatpush1.msra.mxu0 %v982
  %1097 = vmatprep.subr.mxu0 0.0
  %1098 = vmatpush1.msra.mxu0 %v983
  %1099 = vmatprep.subr.mxu0 0.0
  %1100 = vmatpush1.msra.mxu0 %v984
  %1101 = vmatprep.subr.mxu0 0.0
  %1102 = vmatpush1.msra.mxu0 %v985
  %1103 = vmatprep.subr.mxu0 0.0
  %1104 = vmatpush1.msra.mxu0 %v986
  %1105 = vmatprep.subr.mxu0 0.0
  %1106 = vmatpush1.msra.mxu0 %v987
  %1107 = vmatprep.subr.mxu0 0.0
  %1108 = vmatpush1.msra.mxu0 0.0
  %1109 = vmatprep.subr.mxu0 0.0
  %1110 = vmatpush1.msra.mxu0 0.0
  %1111 = vmatprep.subr.mxu0 0.0
  %1112 = vmatpush1.msra.mxu0 0.0
  %1113 = vmatprep.subr.mxu0 0.0
  %1114 = vmatpush1.msra.mxu0 0.0
  %1115 = vmatprep.subr.mxu0 0.0
  %1116 = vmatpush1.msra.mxu0 0.0
  %1117 = vmatprep.subr.mxu0 0.0
  %1118 = vmatpush1.msra.mxu0 0.0
  %1119 = vmatprep.subr.mxu0 0.0
  %1120 = vmatpush1.msra.mxu0 0.0
  %1121 = vmatprep.subr.mxu0 0.0
  %1122 = vmatpush1.msra.mxu0 0.0
  %1123 = vmatprep.subr.mxu0 0.0
  %1124 = vmatpush1.msra.mxu0 0.0
  %1125 = vmatprep.subr.mxu0 0.0
  %1126 = vmatpush1.msra.mxu0 0.0
  %1127 = vmatprep.subr.mxu0 0.0
  %1128 = vmatpush1.msra.mxu0 0.0
  %1129 = vmatprep.subr.mxu0 0.0
  %1130 = vmatpush1.msra.mxu0 0.0
  %1131 = vmatprep.subr.mxu0 0.0
  %1132 = vmatpush1.msra.mxu0 0.0
  %1133 = vmatprep.subr.mxu0 0.0
  %1134 = vmatpush1.msra.mxu0 0.0
  %1135 = vmatprep.subr.mxu0 0.0
  %1136 = vmatpush1.msra.mxu0 0.0
  %1137 = vmatprep.subr.mxu0 0.0
  %1138 = vmatpush1.msra.mxu0 0.0
  %1139 = vmatprep.subr.mxu0 0.0
  %1140 = vmatpush1.msra.mxu0 0.0
  %1141 = vmatprep.subr.mxu0 0.0
  %1142 = vmatpush1.msra.mxu0 0.0
  %1143 = vmatprep.subr.mxu0 0.0
  %1144 = vmatpush1.msra.mxu0 0.0
  %1145 = vmatprep.subr.mxu0 0.0
  %1146 = vmatpush1.msra.mxu0 0.0
  %1147 = vmatprep.subr.mxu0 0.0
  %1148 = vmatpush1.msra.mxu0 0.0
  %1149 = vmatprep.subr.mxu0 0.0
  %1150 = vmatpush1.msra.mxu0 0.0
  %1151 = vmatprep.subr.mxu0 0.0
  %1152 = vmatpush1.msra.mxu0 0.0
  %1153 = vmatprep.subr.mxu0 0.0
  %1154 = vmatpush1.msra.mxu0 0.0
  %1155 = vmatprep.mubr.f32.mxu0 0.0
  %1156 = vmatmul.mubr.f32.gmra.mrb[0].mxu0 %v995
  %v1157 = vpop.f32.mrb[0].mxu0
  %v1158 = vadd.f32 %v993, %v1157
  %v1159 = vpop.f32.mrb[0].mxu0
  %1160 = vmatprep.mubr.f32.mxu0 0.0
  %1161 = vmatmul.mubr.f32.gmra.mrb[0].mxu0 %v998
  %v1162 = vpop.f32.mrb[0].mxu0
  %v1163 = vadd.f32 %v993, %v1162
  %v1164 = vpop.f32.mrb[0].mxu0
  %1165 = vmatprep.mubr.f32.mxu0 0.0
  %1166 = vmatmul.mubr.f32.gmra.mrb[0].mxu0 %v1001
  %v1167 = vpop.f32.mrb[0].mxu0
  %v1168 = vadd.f32 %v993, %v1167
  %v1169 = vpop.f32.mrb[0].mxu0
  %1170 = vmatprep.mubr.f32.mxu0 0.0
  %1171 = vmatmul.mubr.f32.gmra.mrb[0].mxu0 %v1004
  %v1172 = vpop.f32.mrb[0].mxu0
  %v1173 = vadd.f32 %v993, %v1172
  %v1174 = vpop.f32.mrb[0].mxu0
  %1175 = vdwg.mxu0
  %v1176 = vxor.u32 %v1073, 2147483648
  %v1177 = vxor.u32 %v1078, 2147483648
  %v1178 = vxor.u32 %v1083, 2147483648
  %v1179 = vxor.u32 %v1088, 2147483648
  %v1180 = vxor.u32 %v1158, 2147483648
  %v1181 = vxor.u32 %v1163, 2147483648
  %v1182 = vxor.u32 %v1168, 2147483648
  %v1183 = vxor.u32 %v1173, 2147483648
  %v1184 = vmul.f32 %v1176, 1.442695
  %v1185 = vpow.pop %v1184
  %v1186 = vmul.f32 %v1177, 1.442695
  %v1187 = vpow.pop %v1186
  %v1188 = vmul.f32 %v1178, 1.442695
  %v1189 = vpow.pop %v1188
  %v1190 = vmul.f32 %v1179, 1.442695
  %v1191 = vpow.pop %v1190
  %v1192 = vmul.f32 %v1180, 1.442695
  %v1193 = vpow.pop %v1192
  %v1194 = vmul.f32 %v1181, 1.442695
  %v1195 = vpow.pop %v1194
  %v1196 = vmul.f32 %v1182, 1.442695
  %v1197 = vpow.pop %v1196
  %v1198 = vmul.f32 %v1183, 1.442695
  %v1199 = vpow.pop %v1198
  %v1200 = vadd.f32 %v1185, 1.0
  %v1201 = vadd.f32 %v1187, 1.0
  %v1202 = vadd.f32 %v1189, 1.0
  %v1203 = vadd.f32 %v1191, 1.0
  %v1204 = vadd.f32 %v1193, 1.0
  %v1205 = vadd.f32 %v1195, 1.0
  %v1206 = vadd.f32 %v1197, 1.0
  %v1207 = vadd.f32 %v1199, 1.0
  %v1208 = vrcp.pop %v1200
  %v1209 = vmul.f32 1.0, %v1208
  %v1210 = vrcp.pop %v1201
  %v1211 = vmul.f32 1.0, %v1210
  %v1212 = vrcp.pop %v1202
  %v1213 = vmul.f32 1.0, %v1212
  %v1214 = vrcp.pop %v1203
  %v1215 = vmul.f32 1.0, %v1214
  %v1216 = vrcp.pop %v1204
  %v1217 = vmul.f32 1.0, %v1216
  %v1218 = vrcp.pop %v1205
  %v1219 = vmul.f32 1.0, %v1218
  %v1220 = vrcp.pop %v1206
  %v1221 = vmul.f32 1.0, %v1220
  %v1222 = vrcp.pop %v1207
  %v1223 = vmul.f32 1.0, %v1222
  %v1224 = vld [vmem:[%s5] sm:$0x3]
  %vm1225 = vcmask 15360
  %v1227 = vsel %vm1225, %v1209, 0
  %v1230 = vsel %vm1225, %v1211, 0
  %v1233 = vsel %vm1225, %v1213, 0
  %v1236 = vsel %vm1225, %v1215, 0
  %v1239 = vsel %vm1225, %v1217, 0
  %v1242 = vsel %vm1225, %v1219, 0
  %v1245 = vsel %vm1225, %v1221, 0
  %v1248 = vsel %vm1225, %v1223, 0
  %vm1250 = vcmask 1041408
  %v1252 = vsel %vm1250, %v1224, 0
  %1254 = vmatprep.subr.mxu0 0.0
  %1255 = vmatpush1.msra.mxu0 %v1252
  %1256 = vmatprep.subr.mxu0 0.0
  %1257 = vmatpush1.msra.mxu0 0.0
  %1258 = vmatprep.subr.mxu0 0.0
  %1259 = vmatpush1.msra.mxu0 0.0
  %1260 = vmatprep.subr.mxu0 0.0
  %1261 = vmatpush1.msra.mxu0 0.0
  %1262 = vmatprep.subr.mxu0 0.0
  %1263 = vmatpush1.msra.mxu0 0.0
  %1264 = vmatprep.subr.mxu0 0.0
  %1265 = vmatpush1.msra.mxu0 0.0
  %1266 = vmatprep.subr.mxu0 0.0
  %1267 = vmatpush1.msra.mxu0 0.0
  %1268 = vmatprep.subr.mxu0 0.0
  %1269 = vmatpush1.msra.mxu0 0.0
  %1270 = vmatprep.subr.mxu0 0.0
  %1271 = vmatpush1.msra.mxu0 0.0
  %1272 = vmatprep.subr.mxu0 0.0
  %1273 = vmatpush1.msra.mxu0 0.0
  %1274 = vmatprep.subr.mxu0 0.0
  %1275 = vmatpush1.msra.mxu0 0.0
  %1276 = vmatprep.subr.mxu0 0.0
  %1277 = vmatpush1.msra.mxu0 0.0
  %1278 = vmatprep.subr.mxu0 0.0
  %1279 = vmatpush1.msra.mxu0 0.0
  %1280 = vmatprep.subr.mxu0 0.0
  %1281 = vmatpush1.msra.mxu0 0.0
  %1282 = vmatprep.subr.mxu0 0.0
  %1283 = vmatpush1.msra.mxu0 0.0
  %1284 = vmatprep.subr.mxu0 0.0
  %1285 = vmatpush1.msra.mxu0 0.0
  %1286 = vmatprep.subr.mxu0 0.0
  %1287 = vmatpush1.msra.mxu0 0.0
  %1288 = vmatprep.subr.mxu0 0.0
  %1289 = vmatpush1.msra.mxu0 0.0
  %1290 = vmatprep.subr.mxu0 0.0
  %1291 = vmatpush1.msra.mxu0 0.0
  %1292 = vmatprep.subr.mxu0 0.0
  %1293 = vmatpush1.msra.mxu0 0.0
  %1294 = vmatprep.subr.mxu0 0.0
  %1295 = vmatpush1.msra.mxu0 0.0
  %1296 = vmatprep.subr.mxu0 0.0
  %1297 = vmatpush1.msra.mxu0 0.0
  %1298 = vmatprep.subr.mxu0 0.0
  %1299 = vmatpush1.msra.mxu0 0.0
  %1300 = vmatprep.subr.mxu0 0.0
  %1301 = vmatpush1.msra.mxu0 0.0
  %1302 = vmatprep.subr.mxu0 0.0
  %1303 = vmatpush1.msra.mxu0 0.0
  %1304 = vmatprep.subr.mxu0 0.0
  %1305 = vmatpush1.msra.mxu0 0.0
  %1306 = vmatprep.subr.mxu0 0.0
  %1307 = vmatpush1.msra.mxu0 0.0
  %1308 = vmatprep.subr.mxu0 0.0
  %1309 = vmatpush1.msra.mxu0 0.0
  %1310 = vmatprep.subr.mxu0 0.0
  %1311 = vmatpush1.msra.mxu0 0.0
  %1312 = vmatprep.subr.mxu0 0.0
  %1313 = vmatpush1.msra.mxu0 0.0
  %1314 = vmatprep.subr.mxu0 0.0
  %1315 = vmatpush1.msra.mxu0 0.0
  %1316 = vmatprep.subr.mxu0 0.0
  %1317 = vmatpush1.msra.mxu0 0.0
  %1318 = vmatprep.mubr.f32.mxu0 0.0
  %1319 = vmatmul.mubr.f32.gmra.mrb[0].mxu0 %v1227
  %v1320 = vpop.f32.mrb[0].mxu0
  %v1321 = vadd.f32 0.0, %v1320
  %v1322 = vpop.f32.mrb[0].mxu0
  %1323 = vmatprep.mubr.f32.mxu0 0.0
  %1324 = vmatmul.mubr.f32.gmra.mrb[0].mxu0 %v1230
  %v1325 = vpop.f32.mrb[0].mxu0
  %v1326 = vadd.f32 0.0, %v1325
  %v1327 = vpop.f32.mrb[0].mxu0
  %1328 = vmatprep.mubr.f32.mxu0 0.0
  %1329 = vmatmul.mubr.f32.gmra.mrb[0].mxu0 %v1233
  %v1330 = vpop.f32.mrb[0].mxu0
  %v1331 = vadd.f32 0.0, %v1330
  %v1332 = vpop.f32.mrb[0].mxu0
  %1333 = vmatprep.mubr.f32.mxu0 0.0
  %1334 = vmatmul.mubr.f32.gmra.mrb[0].mxu0 %v1236
  %v1335 = vpop.f32.mrb[0].mxu0
  %v1336 = vadd.f32 0.0, %v1335
  %v1337 = vpop.f32.mrb[0].mxu0
  %1338 = vmatprep.mubr.f32.mxu0 0.0
  %1339 = vmatmul.mubr.f32.gmra.mrb[0].mxu0 %v1239
  %v1340 = vpop.f32.mrb[0].mxu0
  %v1341 = vadd.f32 0.0, %v1340
  %v1342 = vpop.f32.mrb[0].mxu0
  %1343 = vmatprep.mubr.f32.mxu0 0.0
  %1344 = vmatmul.mubr.f32.gmra.mrb[0].mxu0 %v1242
  %v1345 = vpop.f32.mrb[0].mxu0
  %v1346 = vadd.f32 0.0, %v1345
  %v1347 = vpop.f32.mrb[0].mxu0
  %1348 = vmatprep.mubr.f32.mxu0 0.0
  %1349 = vmatmul.mubr.f32.gmra.mrb[0].mxu0 %v1245
  %v1350 = vpop.f32.mrb[0].mxu0
  %v1351 = vadd.f32 0.0, %v1350
  %v1352 = vpop.f32.mrb[0].mxu0
  %1353 = vmatprep.mubr.f32.mxu0 0.0
  %1354 = vmatmul.mubr.f32.gmra.mrb[0].mxu0 %v1248
  %v1355 = vpop.f32.mrb[0].mxu0
  %v1356 = vadd.f32 0.0, %v1355
  %v1357 = vpop.f32.mrb[0].mxu0
  %1358 = vdwg.mxu0
  %v1359 = vmul.f32 %v786, %v1321
  %v1360 = vmul.f32 %v787, %v1326
  %v1361 = vmul.f32 %v788, %v1331
  %v1362 = vmul.f32 %v789, %v1336
  %v1363 = vmul.f32 %v790, %v1341
  %v1364 = vmul.f32 %v791, %v1346
  %v1365 = vmul.f32 %v792, %v1351
  %v1366 = vmul.f32 %v793, %v1356
  %1367 = vst.msk [vmem:[%s7] sm:$0xff] %vm929, %v1359
  %1368 = vst.msk [vmem:[%s7 + $0x8] sm:$0xff] %vm929, %v1360
  %1369 = vst.msk [vmem:[%s7 + $0x10] sm:$0xff] %vm929, %v1361
  %1370 = vst.msk [vmem:[%s7 + $0x18] sm:$0xff] %vm929, %v1362
  %1371 = vst.msk [vmem:[%s7 + $0x20] sm:$0xff] %vm929, %v1363
  %1372 = vst.msk [vmem:[%s7 + $0x28] sm:$0xff] %vm929, %v1364
  %1373 = vst.msk [vmem:[%s7 + $0x30] sm:$0xff] %vm929, %v1365
  %1374 = vst.msk [vmem:[%s7 + $0x38] sm:$0xff] %vm929, %v1366
  %1383 = vrot.lane.b32.xlu0 %v1359, 104
  %v1384 = vpop.permute.xlu0 %1383
  %1385 = vrot.lane.b32.xlu0 %v1360, 104
  %v1386 = vpop.permute.xlu0 %1385
  %1387 = vrot.lane.b32.xlu0 %v1361, 104
  %v1388 = vpop.permute.xlu0 %1387
  %1389 = vrot.lane.b32.xlu0 %v1362, 104
  %v1390 = vpop.permute.xlu0 %1389
  %1391 = vrot.lane.b32.xlu0 %v1363, 104
  %v1392 = vpop.permute.xlu0 %1391
  %1393 = vrot.lane.b32.xlu0 %v1364, 104
  %v1394 = vpop.permute.xlu0 %1393
  %1395 = vrot.lane.b32.xlu0 %v1365, 104
  %v1396 = vpop.permute.xlu0 %1395
  %1397 = vrot.lane.b32.xlu0 %v1366, 104
  %v1398 = vpop.permute.xlu0 %1397
  %s1407 = scalar_lea.vmem %s7, 64
  %1408 = vst.msk [vmem:[%s1407] sm:$0xff] %vm929, %v1384
  %1409 = vst.msk [vmem:[%s1407 + $0x8] sm:$0xff] %vm929, %v1386
  %1410 = vst.msk [vmem:[%s1407 + $0x10] sm:$0xff] %vm929, %v1388
  %1411 = vst.msk [vmem:[%s1407 + $0x18] sm:$0xff] %vm929, %v1390
  %1412 = vst.msk [vmem:[%s1407 + $0x20] sm:$0xff] %vm929, %v1392
  %1413 = vst.msk [vmem:[%s1407 + $0x28] sm:$0xff] %vm929, %v1394
  %1414 = vst.msk [vmem:[%s1407 + $0x30] sm:$0xff] %vm929, %v1396
  %1415 = vst.msk [vmem:[%s1407 + $0x38] sm:$0xff] %vm929, %v1398
  // Predicated region
  $region30: #{dwconv_mobile.1} parent=0 // pred_check
    _
  $region31: #{dwconv_mobile.1} parent=0 // pred_check_branch
    %1417 = sbr.rel (0) target = $region33
  $region32: #{dwconv_mobile.1} parent=0 // pred_region
    _
  $region33: #{dwconv_mobile.1} parent=0 // pred_fallthru
    _
  // Predicated region
  $region34: #{dwconv_mobile.1} parent=0 // pred_check
    _
  $region35: #{dwconv_mobile.1} parent=0 // pred_check_branch
    %1419 = sbr.rel (0) target = $region37
  $region36: #{dwconv_mobile.1} parent=0 // pred_region
    _
  $region37: #{dwconv_mobile.1} parent=0 // pred_fallthru
    _

</llo_original>
